<compile_context>
chip_gen: v5e
topology: v5e:2x2
jax: 0.10.0
libtpu: 0.0.40
codegen_flags: <defaults>
</compile_context>

<pallas_src>
import functools

import jax
import jax.numpy as jnp
from jax import lax
from jax.experimental import pallas as pl
from jax.experimental.pallas import tpu as pltpu


def _round_up(v: int, m: int) -> int:
    return ((v + m - 1) // m) * m


def _rvq_kernel(*refs, num_quantizers: int, codebook_padded: int,
                tile_rows: int, tokens_valid: int, distance_dtype,
                gather_dtype, use_lo_gather: bool, formula_sse: bool):
    """One grid step == one tile of tokens; all Q stages fused (unrolled)."""
    if use_lo_gather:
        (x_ref, cbT_ref, e2_ref, hi_ref, lo_ref,
         out_ref, idx_ref, loss_ref) = refs
    else:
        (x_ref, cbT_ref, e2_ref, hi_ref,
         out_ref, idx_ref, loss_ref) = refs
        lo_ref = None

    Q = num_quantizers
    Cp = codebook_padded
    TN = tile_rows
    i = pl.program_id(0)

    x = x_ref[...].astype(jnp.float32)                   # [TN, Dp]
    res = x                                              # running residual (f32)
    out = jnp.zeros_like(x)                              # running quantized sum

    # Validity mask for padded rows (affects only the reported loss).
    row = lax.broadcasted_iota(jnp.int32, (TN, 1), 0) + i * TN
    valid = (row < tokens_valid).astype(jnp.float32)     # [TN, 1]

    cols = lax.broadcasted_iota(jnp.int32, (TN, Cp), 1)
    q_iota_loss = lax.broadcasted_iota(jnp.int32, (Q, 128), 0)
    q_iota_idx = lax.broadcasted_iota(jnp.int32, (Q, TN), 0)
    loss_tile = jnp.zeros((Q, 128), jnp.float32)
    idx_tile = jnp.zeros((Q, TN), jnp.int32)

    for q in range(Q):                                   # static, unrolled
        e2 = e2_ref[q:q + 1, :]                          # [1, Cp] f32 (pads huge)
        cbT = cbT_ref[q]                                 # [Dp, Cp] pre-cast/transposed

        # argmax_c (res.e_c - 0.5||e_c||^2) == argmin_c ||res - e_c||^2
        score = jnp.dot(res.astype(distance_dtype), cbT,
                        preferred_element_type=jnp.float32) - 0.5 * e2   # [TN, Cp]

        best = jnp.max(score, axis=-1, keepdims=True)                    # [TN, 1]
        idx = jnp.min(jnp.where(score == best, cols, Cp),
                      axis=-1).astype(jnp.int32)                         # [TN]

        # Gather the selected codewords via one-hot matmul on the MXU.
        onehot = (cols == idx[:, None]).astype(gather_dtype)             # [TN, Cp]
        quant = jnp.dot(onehot, hi_ref[q],
                        preferred_element_type=jnp.float32)              # [TN, Dp]
        if lo_ref is not None:
            quant = quant + jnp.dot(onehot, lo_ref[q],
                                    preferred_element_type=jnp.float32)

        # Commitment-loss partial sum for this (tile, stage), padding masked.
        if formula_sse:
            # ||quant - res||^2 == ||res||^2 - 2*best  (exact with f32 distance)
            r2 = jnp.sum(res * res, axis=-1, keepdims=True)
            sse = jnp.sum(jnp.maximum(r2 - 2.0 * best, 0.0) * valid)
        else:
            diff = quant - res
            sse = jnp.sum(diff * diff * valid)

        loss_tile = jnp.where(q_iota_loss == q, sse, loss_tile)
        idx_tile = jnp.where(q_iota_idx == q, idx[None, :], idx_tile)

        out = out + quant
        res = res - quant

    out_ref[...] = out.astype(out_ref.dtype)
    idx_ref[...] = idx_tile[None]
    loss_ref[...] = loss_tile[None]


def residual_quantize(x, codebooks, commitment_weight: float = 1.0, *,
                      tile_rows=None, distance_dtype=jnp.bfloat16,
                      exact_gather: bool = False):
    """x: [B, T, D]; codebooks: [Q, C, D].

    Returns (quantized [B,T,D], indices [B,T,Q] int32, losses [Q] f32).
    """
    B, T, D = x.shape
    Q, C, Dc = codebooks.shape
    assert D == Dc
    N = B * T

    # ---- hardware-aware VMEM cap --------------------------------------------
    try:
        vmem_cap = int(getattr(pltpu.get_tpu_info(), "vmem_capacity_bytes", 0)) \
            or 64 * 2 ** 20
    except Exception:
        vmem_cap = 64 * 2 ** 20
    hard_cap = 96 * 2 ** 20 if vmem_cap >= 100 * 2 ** 20 else 44 * 2 ** 20

    # ---- token tiling (keep >= 2 tiles when possible: megacore sharding) ----
    D_pad = _round_up(max(D, 128), 128)
    C_pad = _round_up(max(C, 128), 128)
    if tile_rows is None:
        if N >= 2048:
            tile_rows = 1024 if vmem_cap >= 100 * 2 ** 20 else 512
        else:
            tile_rows = max(8, _round_up((N + 1) // 2, 8))
    TN = tile_rows
    N_pad = _round_up(max(N, TN), TN)
    num_tiles = N_pad // TN

    x_flat = x.reshape(N, D)
    x_flat = jnp.pad(x_flat, ((0, N_pad - N), (0, D_pad - D)))

    # ---- codebook prep (one-time XLA side): pad, ||e||^2, pre-cast+transpose
    cb_f32 = codebooks.astype(jnp.float32)
    e2 = jnp.sum(cb_f32 * cb_f32, axis=-1)                         # [Q, C]
    e2 = jnp.pad(e2, ((0, 0), (0, C_pad - C)), constant_values=1e30)
    cb_f32 = jnp.pad(cb_f32, ((0, 0), (0, C_pad - C), (0, D_pad - D)))

    # K-major RHS for the distance matmul, already in distance_dtype.
    cbT = jnp.transpose(cb_f32, (0, 2, 1)).astype(distance_dtype)  # [Q, Dp, Cp]

    # Gather operands (bf16 hi/lo split unless an exact f32 gather is asked).
    if exact_gather:
        gathers = (cb_f32,)
        use_lo = False
    elif codebooks.dtype == jnp.bfloat16:
        gathers = (cb_f32.astype(jnp.bfloat16),)   # source bf16 -> gather exact
        use_lo = False
    else:
        hi = cb_f32.astype(jnp.bfloat16)
        lo = (cb_f32 - hi.astype(jnp.float32)).astype(jnp.bfloat16)
        gathers = (hi, lo)
        use_lo = True
    gather_dtype = gathers[0].dtype
    formula_sse = (jnp.dtype(distance_dtype) == jnp.dtype(jnp.float32))

    kernel = functools.partial(
        _rvq_kernel, num_quantizers=Q, codebook_padded=C_pad, tile_rows=TN,
        tokens_valid=N, distance_dtype=distance_dtype,
        gather_dtype=gather_dtype, use_lo_gather=use_lo,
        formula_sse=formula_sse)

    # ---- explicit VMEM budget (resident inputs counted as double-buffered) --
    xb = jnp.dtype(x.dtype).itemsize
    dd_b = jnp.dtype(distance_dtype).itemsize
    g_b = jnp.dtype(gather_dtype).itemsize
    est = (2 * TN * D_pad * xb                        # x tile (dbl-buffered)
           + 2 * TN * D_pad * xb                      # out tile
           + 2 * Q * D_pad * C_pad * dd_b             # resident cbT (x2: safety)
           + 2 * len(gathers) * Q * C_pad * D_pad * g_b
           + 2 * Q * C_pad * 4                        # e2
           + 2 * Q * TN * 4 + 2 * Q * 128 * 4         # idx / loss tiles
           + 4 * TN * C_pad * 4                       # score / one-hot temps
           + 6 * TN * D_pad * 4)                      # res / out / quant temps
    vmem_limit = int(min(hard_cap, max(32 * 2 ** 20, int(1.5 * est))))

    in_specs = [
        pl.BlockSpec((TN, D_pad), lambda i: (i, 0)),            # token tile
        pl.BlockSpec((Q, D_pad, C_pad), lambda i: (0, 0, 0)),   # cbT (resident)
        pl.BlockSpec((Q, C_pad), lambda i: (0, 0)),             # ||e||^2 (resident)
    ] + [pl.BlockSpec((Q, C_pad, D_pad), lambda i: (0, 0, 0))] * len(gathers)

    out_pad, idx_out, loss_part = pl.pallas_call(
        kernel,
        out_shape=(
            jax.ShapeDtypeStruct((N_pad, D_pad), x.dtype),            # quantized
            jax.ShapeDtypeStruct((num_tiles, Q, TN), jnp.int32),      # indices
            jax.ShapeDtypeStruct((num_tiles, Q, 128), jnp.float32),   # partial SSE
        ),
        grid=(num_tiles,),
        in_specs=in_specs,
        out_specs=(
            pl.BlockSpec((TN, D_pad), lambda i: (i, 0)),
            pl.BlockSpec((1, Q, TN), lambda i: (i, 0, 0)),      # lane-dense indices
            pl.BlockSpec((1, Q, 128), lambda i: (i, 0, 0)),     # per-tile partial loss
        ),
        compiler_params=pltpu.CompilerParams(
            dimension_semantics=("parallel",),
            vmem_limit_bytes=vmem_limit),
    )(x_flat, cbT, e2, *gathers)

    quantized = out_pad[:N, :D].reshape(B, T, D)
    indices = jnp.transpose(idx_out, (0, 2, 1)).reshape(N_pad, Q)[:N]
    indices = indices.reshape(B, T, Q)                           # stack(..., dim=-1)
    losses = loss_part[:, :, 0].sum(axis=0) / (N * D) * commitment_weight
    return quantized, indices, losses


def init_codebooks(key, num_quantizers, codebook_size, dim, dtype=jnp.float32):
    # Deterministic synthetic init (PyTorch default is randn codebooks).
    return jax.random.normal(key, (num_quantizers, codebook_size, dim), dtype=dtype)


if __name__ == "__main__":
    # Small shapes consistent with the module's forward:
    #   input_size (dim) = 32, codebook_size = 64, num_quantizers = 4
    #   x: [batch=2, seq=8, dim=32]
    dim = 32
    codebook_size = 64
    num_quantizers = 4
    B, T = 2, 8

    key = jax.random.PRNGKey(0)
    kx, kc = jax.random.split(key)
    x = jax.random.normal(kx, (B, T, dim), dtype=jnp.float32)
    codebooks = init_codebooks(kc, num_quantizers, codebook_size, dim)

    run = jax.jit(residual_quantize)
    quantized, indices, losses = run(x, codebooks)
    jax.block_until_ready((quantized, indices, losses))

    assert quantized.shape == (B, T, dim)
    assert indices.shape == (B, T, num_quantizers)
    assert losses.shape == (num_quantizers,)
    assert bool(jnp.all(indices >= 0)) and bool(jnp.all(indices < codebook_size))
    assert bool(jnp.all(jnp.isfinite(quantized))) and bool(jnp.all(jnp.isfinite(losses)))

    # Self-consistency check: reconstruct quantized output and per-stage losses
    # from the kernel's own indices (independent of argmin precision/ties).
    res = x.reshape(-1, dim)
    out_ref = jnp.zeros_like(res)
    loss_ref = []
    idx_flat = indices.reshape(-1, num_quantizers)
    for q in range(num_quantizers):
        quant = codebooks[q][idx_flat[:, q]]
        loss_ref.append(jnp.mean((quant - res) ** 2))
        out_ref = out_ref + quant
        res = res - quant
    out_ref = out_ref.reshape(B, T, dim)
    loss_ref = jnp.stack(loss_ref)
    assert bool(jnp.allclose(quantized, out_ref, rtol=1e-2, atol=1e-2))
    assert bool(jnp.allclose(losses, loss_ref, rtol=1e-2, atol=1e-2))

    print("KERNEL_OK")
</pallas_src>

<mosaic_0001>
module attributes {stable_mosaic.version = 11 : i64} {
  func.func @_rvq_kernel(%arg0: i32, %arg1: memref<8x128xf32, #tpu.memory_space<vmem>>, %arg2: memref<4x128x128xbf16, #tpu.memory_space<vmem>>, %arg3: memref<4x128xf32, #tpu.memory_space<vmem>>, %arg4: memref<4x128x128xbf16, #tpu.memory_space<vmem>>, %arg5: memref<4x128x128xbf16, #tpu.memory_space<vmem>>, %arg6: memref<8x128xf32, #tpu.memory_space<vmem>>, %arg7: memref<1x4x8xi32, #tpu.memory_space<vmem>>, %arg8: memref<1x4x128xf32, #tpu.memory_space<vmem>>) attributes {dimension_semantics = [#tpu.dimension_semantics<parallel>], iteration_bounds = array<i64: 2>, scalar_prefetch = 0 : i64, scratch_operands = 0 : i64, tpu.core_type = #tpu.core_type<tc>, window_params = [{transform_indices = @transform_0, window_bounds = array<i64: 8, 128>}, {pipeline_mode = #tpu.pipeline_mode<synchronous>, transform_indices = @transform_1, window_bounds = array<i64: 4, 128, 128>}, {pipeline_mode = #tpu.pipeline_mode<synchronous>, transform_indices = @transform_2, window_bounds = array<i64: 4, 128>}, {pipeline_mode = #tpu.pipeline_mode<synchronous>, transform_indices = @transform_3, window_bounds = array<i64: 4, 128, 128>}, {pipeline_mode = #tpu.pipeline_mode<synchronous>, transform_indices = @transform_4, window_bounds = array<i64: 4, 128, 128>}, {transform_indices = @transform_5, window_bounds = array<i64: 8, 128>}, {transform_indices = @transform_6, window_bounds = array<i64: 1, 4, 8>}, {transform_indices = @transform_7, window_bounds = array<i64: 1, 4, 128>}]} {
    %c0 = arith.constant 0 : index
    %c0_0 = arith.constant 0 : index
    %0 = vector.load %arg1[%c0, %c0_0] : memref<8x128xf32, #tpu.memory_space<vmem>>, vector<8x128xf32>
    %cst = arith.constant 0.000000e+00 : f32
    %1 = vector.broadcast %cst : f32 to vector<8x128xf32>
    %2 = tpu.iota {dimensions = array<i32: 0>} : vector<8x1xi32>
    %c8_i32 = arith.constant 8 : i32
    %3 = arith.muli %arg0, %c8_i32 : i32
    %4 = vector.broadcast %3 : i32 to vector<8x1xi32>
    %5 = arith.addi %2, %4 : vector<8x1xi32>
    %c16_i32 = arith.constant 16 : i32
    %6 = vector.broadcast %c16_i32 : i32 to vector<8x1xi32>
    %7 = arith.cmpi slt, %5, %6 : vector<8x1xi32>
    %8 = arith.extui %7 : vector<8x1xi1> to vector<8x1xi32>
    %9 = arith.sitofp %8 : vector<8x1xi32> to vector<8x1xf32>
    %10 = tpu.iota {dimensions = array<i32: 1>} : vector<8x128xi32>
    %11 = tpu.iota {dimensions = array<i32: 0>} : vector<4x128xi32>
    %12 = tpu.iota {dimensions = array<i32: 0>} : vector<4x8xi32>
    %cst_1 = arith.constant 0.000000e+00 : f32
    %13 = vector.broadcast %cst_1 : f32 to vector<4x128xf32>
    %c0_i32 = arith.constant 0 : i32
    %14 = vector.broadcast %c0_i32 : i32 to vector<4x8xi32>
    %c0_2 = arith.constant 0 : index
    %c0_3 = arith.constant 0 : index
    %15 = vector.load %arg3[%c0_2, %c0_3] : memref<4x128xf32, #tpu.memory_space<vmem>>, vector<1x128xf32>
    %c0_4 = arith.constant 0 : index
    %c0_5 = arith.constant 0 : index
    %c0_6 = arith.constant 0 : index
    %16 = vector.load %arg2[%c0_4, %c0_5, %c0_6] : memref<4x128x128xbf16, #tpu.memory_space<vmem>>, vector<1x128x128xbf16>
    %17 = vector.shape_cast %16 : vector<1x128x128xbf16> to vector<128x128xbf16>
    %18 = arith.truncf %0 : vector<8x128xf32> to vector<8x128xbf16>
    %cst_7 = arith.constant dense<0.000000e+00> : vector<8x128xf32>
    %19 = tpu.matmul %18, %17, %cst_7 {dimension_numbers = #tpu.dot_dimension_numbers<[1], [0], [0], [1], [0, 0, 1, 1], [], []>} : vector<8x128xbf16>, vector<128x128xbf16>, vector<8x128xf32> -> vector<8x128xf32>
    %cst_8 = arith.constant 5.000000e-01 : f32
    %20 = vector.broadcast %cst_8 : f32 to vector<1x128xf32>
    %21 = arith.mulf %20, %15 : vector<1x128xf32>
    %22 = vector.broadcast %21 : vector<1x128xf32> to vector<8x128xf32>
    %23 = arith.subf %19, %22 : vector<8x128xf32>
    %cst_9 = arith.constant dense<0xFF800000> : vector<8xf32>
    %24 = vector.multi_reduction <maximumf>, %23, %cst_9 [1] : vector<8x128xf32> to vector<8xf32>
    %25 = vector.shape_cast %24 : vector<8xf32> to vector<8x1xf32>
    %26 = vector.broadcast %25 : vector<8x1xf32> to vector<8x128xf32>
    %27 = arith.cmpf oeq, %23, %26 : vector<8x128xf32>
    %c128_i32 = arith.constant 128 : i32
    %28 = vector.broadcast %c128_i32 : i32 to vector<8x128xi32>
    %29 = arith.select %27, %10, %28 : vector<8x128xi1>, vector<8x128xi32>
    %cst_10 = arith.constant dense<2147483647> : vector<8xi32>
    %30 = vector.multi_reduction <minsi>, %29, %cst_10 [1] : vector<8x128xi32> to vector<8xi32>
    %31 = vector.shape_cast %30 : vector<8xi32> to vector<8x1xi32>
    %32 = vector.broadcast %31 : vector<8x1xi32> to vector<8x128xi32>
    %33 = arith.cmpi eq, %10, %32 : vector<8x128xi32>
    %34 = arith.extui %33 : vector<8x128xi1> to vector<8x128xi32>
    %35 = arith.sitofp %34 : vector<8x128xi32> to vector<8x128xf32>
    %36 = arith.truncf %35 : vector<8x128xf32> to vector<8x128xbf16>
    %c0_11 = arith.constant 0 : index
    %c0_12 = arith.constant 0 : index
    %c0_13 = arith.constant 0 : index
    %37 = vector.load %arg4[%c0_11, %c0_12, %c0_13] : memref<4x128x128xbf16, #tpu.memory_space<vmem>>, vector<1x128x128xbf16>
    %38 = vector.shape_cast %37 : vector<1x128x128xbf16> to vector<128x128xbf16>
    %cst_14 = arith.constant dense<0.000000e+00> : vector<8x128xf32>
    %39 = tpu.matmul %36, %38, %cst_14 {dimension_numbers = #tpu.dot_dimension_numbers<[1], [0], [0], [1], [0, 0, 1, 1], [], []>} : vector<8x128xbf16>, vector<128x128xbf16>, vector<8x128xf32> -> vector<8x128xf32>
    %c0_15 = arith.constant 0 : index
    %c0_16 = arith.constant 0 : index
    %c0_17 = arith.constant 0 : index
    %40 = vector.load %arg5[%c0_15, %c0_16, %c0_17] : memref<4x128x128xbf16, #tpu.memory_space<vmem>>, vector<1x128x128xbf16>
    %41 = vector.shape_cast %40 : vector<1x128x128xbf16> to vector<128x128xbf16>
    %cst_18 = arith.constant dense<0.000000e+00> : vector<8x128xf32>
    %42 = tpu.matmul %36, %41, %cst_18 {dimension_numbers = #tpu.dot_dimension_numbers<[1], [0], [0], [1], [0, 0, 1, 1], [], []>} : vector<8x128xbf16>, vector<128x128xbf16>, vector<8x128xf32> -> vector<8x128xf32>
    %43 = arith.addf %39, %42 : vector<8x128xf32>
    %44 = arith.subf %43, %0 : vector<8x128xf32>
    %45 = arith.mulf %44, %44 : vector<8x128xf32>
    %46 = vector.broadcast %9 : vector<8x1xf32> to vector<8x128xf32>
    %47 = arith.mulf %45, %46 : vector<8x128xf32>
    %48 = vector.shape_cast %47 : vector<8x128xf32> to vector<1x8x128xf32>
    %cst_19 = arith.constant dense<0.000000e+00> : vector<1xf32>
    %49 = vector.multi_reduction <add>, %48, %cst_19 [1, 2] : vector<1x8x128xf32> to vector<1xf32>
    %50 = vector.shape_cast %49 : vector<1xf32> to vector<1x1x1xf32>
    %51 = vector.extract %50[0, 0, 0] : f32 from vector<1x1x1xf32>
    %c0_i32_20 = arith.constant 0 : i32
    %52 = vector.broadcast %c0_i32_20 : i32 to vector<4x128xi32>
    %53 = arith.cmpi eq, %11, %52 : vector<4x128xi32>
    %54 = vector.broadcast %51 : f32 to vector<4x128xf32>
    %55 = arith.select %53, %54, %13 : vector<4x128xi1>, vector<4x128xf32>
    %c0_i32_21 = arith.constant 0 : i32
    %56 = vector.broadcast %c0_i32_21 : i32 to vector<4x8xi32>
    %57 = arith.cmpi eq, %12, %56 : vector<4x8xi32>
    %58 = vector.shape_cast %30 : vector<8xi32> to vector<1x8xi32>
    %59 = vector.shape_cast %58 : vector<1x8xi32> to vector<1x8xi32>
    %60 = vector.broadcast %59 : vector<1x8xi32> to vector<4x8xi32>
    %61 = arith.select %57, %60, %14 : vector<4x8xi1>, vector<4x8xi32>
    %62 = arith.addf %1, %43 : vector<8x128xf32>
    %63 = arith.subf %0, %43 : vector<8x128xf32>
    %c1 = arith.constant 1 : index
    %c0_22 = arith.constant 0 : index
    %64 = vector.load %arg3[%c1, %c0_22] : memref<4x128xf32, #tpu.memory_space<vmem>>, vector<1x128xf32>
    %c1_23 = arith.constant 1 : index
    %c0_24 = arith.constant 0 : index
    %c0_25 = arith.constant 0 : index
    %65 = vector.load %arg2[%c1_23, %c0_24, %c0_25] : memref<4x128x128xbf16, #tpu.memory_space<vmem>>, vector<1x128x128xbf16>
    %66 = vector.shape_cast %65 : vector<1x128x128xbf16> to vector<128x128xbf16>
    %67 = arith.truncf %63 : vector<8x128xf32> to vector<8x128xbf16>
    %cst_26 = arith.constant dense<0.000000e+00> : vector<8x128xf32>
    %68 = tpu.matmul %67, %66, %cst_26 {dimension_numbers = #tpu.dot_dimension_numbers<[1], [0], [0], [1], [0, 0, 1, 1], [], []>} : vector<8x128xbf16>, vector<128x128xbf16>, vector<8x128xf32> -> vector<8x128xf32>
    %cst_27 = arith.constant 5.000000e-01 : f32
    %69 = vector.broadcast %cst_27 : f32 to vector<1x128xf32>
    %70 = arith.mulf %69, %64 : vector<1x128xf32>
    %71 = vector.broadcast %70 : vector<1x128xf32> to vector<8x128xf32>
    %72 = arith.subf %68, %71 : vector<8x128xf32>
    %cst_28 = arith.constant dense<0xFF800000> : vector<8xf32>
    %73 = vector.multi_reduction <maximumf>, %72, %cst_28 [1] : vector<8x128xf32> to vector<8xf32>
    %74 = vector.shape_cast %73 : vector<8xf32> to vector<8x1xf32>
    %75 = vector.broadcast %74 : vector<8x1xf32> to vector<8x128xf32>
    %76 = arith.cmpf oeq, %72, %75 : vector<8x128xf32>
    %c128_i32_29 = arith.constant 128 : i32
    %77 = vector.broadcast %c128_i32_29 : i32 to vector<8x128xi32>
    %78 = arith.select %76, %10, %77 : vector<8x128xi1>, vector<8x128xi32>
    %cst_30 = arith.constant dense<2147483647> : vector<8xi32>
    %79 = vector.multi_reduction <minsi>, %78, %cst_30 [1] : vector<8x128xi32> to vector<8xi32>
    %80 = vector.shape_cast %79 : vector<8xi32> to vector<8x1xi32>
    %81 = vector.broadcast %80 : vector<8x1xi32> to vector<8x128xi32>
    %82 = arith.cmpi eq, %10, %81 : vector<8x128xi32>
    %83 = arith.extui %82 : vector<8x128xi1> to vector<8x128xi32>
    %84 = arith.sitofp %83 : vector<8x128xi32> to vector<8x128xf32>
    %85 = arith.truncf %84 : vector<8x128xf32> to vector<8x128xbf16>
    %c1_31 = arith.constant 1 : index
    %c0_32 = arith.constant 0 : index
    %c0_33 = arith.constant 0 : index
    %86 = vector.load %arg4[%c1_31, %c0_32, %c0_33] : memref<4x128x128xbf16, #tpu.memory_space<vmem>>, vector<1x128x128xbf16>
    %87 = vector.shape_cast %86 : vector<1x128x128xbf16> to vector<128x128xbf16>
    %cst_34 = arith.constant dense<0.000000e+00> : vector<8x128xf32>
    %88 = tpu.matmul %85, %87, %cst_34 {dimension_numbers = #tpu.dot_dimension_numbers<[1], [0], [0], [1], [0, 0, 1, 1], [], []>} : vector<8x128xbf16>, vector<128x128xbf16>, vector<8x128xf32> -> vector<8x128xf32>
    %c1_35 = arith.constant 1 : index
    %c0_36 = arith.constant 0 : index
    %c0_37 = arith.constant 0 : index
    %89 = vector.load %arg5[%c1_35, %c0_36, %c0_37] : memref<4x128x128xbf16, #tpu.memory_space<vmem>>, vector<1x128x128xbf16>
    %90 = vector.shape_cast %89 : vector<1x128x128xbf16> to vector<128x128xbf16>
    %cst_38 = arith.constant dense<0.000000e+00> : vector<8x128xf32>
    %91 = tpu.matmul %85, %90, %cst_38 {dimension_numbers = #tpu.dot_dimension_numbers<[1], [0], [0], [1], [0, 0, 1, 1], [], []>} : vector<8x128xbf16>, vector<128x128xbf16>, vector<8x128xf32> -> vector<8x128xf32>
    %92 = arith.addf %88, %91 : vector<8x128xf32>
    %93 = arith.subf %92, %63 : vector<8x128xf32>
    %94 = arith.mulf %93, %93 : vector<8x128xf32>
    %95 = vector.broadcast %9 : vector<8x1xf32> to vector<8x128xf32>
    %96 = arith.mulf %94, %95 : vector<8x128xf32>
    %97 = vector.shape_cast %96 : vector<8x128xf32> to vector<1x8x128xf32>
    %cst_39 = arith.constant dense<0.000000e+00> : vector<1xf32>
    %98 = vector.multi_reduction <add>, %97, %cst_39 [1, 2] : vector<1x8x128xf32> to vector<1xf32>
    %99 = vector.shape_cast %98 : vector<1xf32> to vector<1x1x1xf32>
    %100 = vector.extract %99[0, 0, 0] : f32 from vector<1x1x1xf32>
    %c1_i32 = arith.constant 1 : i32
    %101 = vector.broadcast %c1_i32 : i32 to vector<4x128xi32>
    %102 = arith.cmpi eq, %11, %101 : vector<4x128xi32>
    %103 = vector.broadcast %100 : f32 to vector<4x128xf32>
    %104 = arith.select %102, %103, %55 : vector<4x128xi1>, vector<4x128xf32>
    %c1_i32_40 = arith.constant 1 : i32
    %105 = vector.broadcast %c1_i32_40 : i32 to vector<4x8xi32>
    %106 = arith.cmpi eq, %12, %105 : vector<4x8xi32>
    %107 = vector.shape_cast %79 : vector<8xi32> to vector<1x8xi32>
    %108 = vector.shape_cast %107 : vector<1x8xi32> to vector<1x8xi32>
    %109 = vector.broadcast %108 : vector<1x8xi32> to vector<4x8xi32>
    %110 = arith.select %106, %109, %61 : vector<4x8xi1>, vector<4x8xi32>
    %111 = arith.addf %62, %92 : vector<8x128xf32>
    %112 = arith.subf %63, %92 : vector<8x128xf32>
    %c2 = arith.constant 2 : index
    %c0_41 = arith.constant 0 : index
    %113 = vector.load %arg3[%c2, %c0_41] : memref<4x128xf32, #tpu.memory_space<vmem>>, vector<1x128xf32>
    %c2_42 = arith.constant 2 : index
    %c0_43 = arith.constant 0 : index
    %c0_44 = arith.constant 0 : index
    %114 = vector.load %arg2[%c2_42, %c0_43, %c0_44] : memref<4x128x128xbf16, #tpu.memory_space<vmem>>, vector<1x128x128xbf16>
    %115 = vector.shape_cast %114 : vector<1x128x128xbf16> to vector<128x128xbf16>
    %116 = arith.truncf %112 : vector<8x128xf32> to vector<8x128xbf16>
    %cst_45 = arith.constant dense<0.000000e+00> : vector<8x128xf32>
    %117 = tpu.matmul %116, %115, %cst_45 {dimension_numbers = #tpu.dot_dimension_numbers<[1], [0], [0], [1], [0, 0, 1, 1], [], []>} : vector<8x128xbf16>, vector<128x128xbf16>, vector<8x128xf32> -> vector<8x128xf32>
    %cst_46 = arith.constant 5.000000e-01 : f32
    %118 = vector.broadcast %cst_46 : f32 to vector<1x128xf32>
    %119 = arith.mulf %118, %113 : vector<1x128xf32>
    %120 = vector.broadcast %119 : vector<1x128xf32> to vector<8x128xf32>
    %121 = arith.subf %117, %120 : vector<8x128xf32>
    %cst_47 = arith.constant dense<0xFF800000> : vector<8xf32>
    %122 = vector.multi_reduction <maximumf>, %121, %cst_47 [1] : vector<8x128xf32> to vector<8xf32>
    %123 = vector.shape_cast %122 : vector<8xf32> to vector<8x1xf32>
    %124 = vector.broadcast %123 : vector<8x1xf32> to vector<8x128xf32>
    %125 = arith.cmpf oeq, %121, %124 : vector<8x128xf32>
    %c128_i32_48 = arith.constant 128 : i32
    %126 = vector.broadcast %c128_i32_48 : i32 to vector<8x128xi32>
    %127 = arith.select %125, %10, %126 : vector<8x128xi1>, vector<8x128xi32>
    %cst_49 = arith.constant dense<2147483647> : vector<8xi32>
    %128 = vector.multi_reduction <minsi>, %127, %cst_49 [1] : vector<8x128xi32> to vector<8xi32>
    %129 = vector.shape_cast %128 : vector<8xi32> to vector<8x1xi32>
    %130 = vector.broadcast %129 : vector<8x1xi32> to vector<8x128xi32>
    %131 = arith.cmpi eq, %10, %130 : vector<8x128xi32>
    %132 = arith.extui %131 : vector<8x128xi1> to vector<8x128xi32>
    %133 = arith.sitofp %132 : vector<8x128xi32> to vector<8x128xf32>
    %134 = arith.truncf %133 : vector<8x128xf32> to vector<8x128xbf16>
    %c2_50 = arith.constant 2 : index
    %c0_51 = arith.constant 0 : index
    %c0_52 = arith.constant 0 : index
    %135 = vector.load %arg4[%c2_50, %c0_51, %c0_52] : memref<4x128x128xbf16, #tpu.memory_space<vmem>>, vector<1x128x128xbf16>
    %136 = vector.shape_cast %135 : vector<1x128x128xbf16> to vector<128x128xbf16>
    %cst_53 = arith.constant dense<0.000000e+00> : vector<8x128xf32>
    %137 = tpu.matmul %134, %136, %cst_53 {dimension_numbers = #tpu.dot_dimension_numbers<[1], [0], [0], [1], [0, 0, 1, 1], [], []>} : vector<8x128xbf16>, vector<128x128xbf16>, vector<8x128xf32> -> vector<8x128xf32>
    %c2_54 = arith.constant 2 : index
    %c0_55 = arith.constant 0 : index
    %c0_56 = arith.constant 0 : index
    %138 = vector.load %arg5[%c2_54, %c0_55, %c0_56] : memref<4x128x128xbf16, #tpu.memory_space<vmem>>, vector<1x128x128xbf16>
    %139 = vector.shape_cast %138 : vector<1x128x128xbf16> to vector<128x128xbf16>
    %cst_57 = arith.constant dense<0.000000e+00> : vector<8x128xf32>
    %140 = tpu.matmul %134, %139, %cst_57 {dimension_numbers = #tpu.dot_dimension_numbers<[1], [0], [0], [1], [0, 0, 1, 1], [], []>} : vector<8x128xbf16>, vector<128x128xbf16>, vector<8x128xf32> -> vector<8x128xf32>
    %141 = arith.addf %137, %140 : vector<8x128xf32>
    %142 = arith.subf %141, %112 : vector<8x128xf32>
    %143 = arith.mulf %142, %142 : vector<8x128xf32>
    %144 = vector.broadcast %9 : vector<8x1xf32> to vector<8x128xf32>
    %145 = arith.mulf %143, %144 : vector<8x128xf32>
    %146 = vector.shape_cast %145 : vector<8x128xf32> to vector<1x8x128xf32>
    %cst_58 = arith.constant dense<0.000000e+00> : vector<1xf32>
    %147 = vector.multi_reduction <add>, %146, %cst_58 [1, 2] : vector<1x8x128xf32> to vector<1xf32>
    %148 = vector.shape_cast %147 : vector<1xf32> to vector<1x1x1xf32>
    %149 = vector.extract %148[0, 0, 0] : f32 from vector<1x1x1xf32>
    %c2_i32 = arith.constant 2 : i32
    %150 = vector.broadcast %c2_i32 : i32 to vector<4x128xi32>
    %151 = arith.cmpi eq, %11, %150 : vector<4x128xi32>
    %152 = vector.broadcast %149 : f32 to vector<4x128xf32>
    %153 = arith.select %151, %152, %104 : vector<4x128xi1>, vector<4x128xf32>
    %c2_i32_59 = arith.constant 2 : i32
    %154 = vector.broadcast %c2_i32_59 : i32 to vector<4x8xi32>
    %155 = arith.cmpi eq, %12, %154 : vector<4x8xi32>
    %156 = vector.shape_cast %128 : vector<8xi32> to vector<1x8xi32>
    %157 = vector.shape_cast %156 : vector<1x8xi32> to vector<1x8xi32>
    %158 = vector.broadcast %157 : vector<1x8xi32> to vector<4x8xi32>
    %159 = arith.select %155, %158, %110 : vector<4x8xi1>, vector<4x8xi32>
    %160 = arith.addf %111, %141 : vector<8x128xf32>
    %161 = arith.subf %112, %141 : vector<8x128xf32>
    %c3 = arith.constant 3 : index
    %c0_60 = arith.constant 0 : index
    %162 = vector.load %arg3[%c3, %c0_60] : memref<4x128xf32, #tpu.memory_space<vmem>>, vector<1x128xf32>
    %c3_61 = arith.constant 3 : index
    %c0_62 = arith.constant 0 : index
    %c0_63 = arith.constant 0 : index
    %163 = vector.load %arg2[%c3_61, %c0_62, %c0_63] : memref<4x128x128xbf16, #tpu.memory_space<vmem>>, vector<1x128x128xbf16>
    %164 = vector.shape_cast %163 : vector<1x128x128xbf16> to vector<128x128xbf16>
    %165 = arith.truncf %161 : vector<8x128xf32> to vector<8x128xbf16>
    %cst_64 = arith.constant dense<0.000000e+00> : vector<8x128xf32>
    %166 = tpu.matmul %165, %164, %cst_64 {dimension_numbers = #tpu.dot_dimension_numbers<[1], [0], [0], [1], [0, 0, 1, 1], [], []>} : vector<8x128xbf16>, vector<128x128xbf16>, vector<8x128xf32> -> vector<8x128xf32>
    %cst_65 = arith.constant 5.000000e-01 : f32
    %167 = vector.broadcast %cst_65 : f32 to vector<1x128xf32>
    %168 = arith.mulf %167, %162 : vector<1x128xf32>
    %169 = vector.broadcast %168 : vector<1x128xf32> to vector<8x128xf32>
    %170 = arith.subf %166, %169 : vector<8x128xf32>
    %cst_66 = arith.constant dense<0xFF800000> : vector<8xf32>
    %171 = vector.multi_reduction <maximumf>, %170, %cst_66 [1] : vector<8x128xf32> to vector<8xf32>
    %172 = vector.shape_cast %171 : vector<8xf32> to vector<8x1xf32>
    %173 = vector.broadcast %172 : vector<8x1xf32> to vector<8x128xf32>
    %174 = arith.cmpf oeq, %170, %173 : vector<8x128xf32>
    %c128_i32_67 = arith.constant 128 : i32
    %175 = vector.broadcast %c128_i32_67 : i32 to vector<8x128xi32>
    %176 = arith.select %174, %10, %175 : vector<8x128xi1>, vector<8x128xi32>
    %cst_68 = arith.constant dense<2147483647> : vector<8xi32>
    %177 = vector.multi_reduction <minsi>, %176, %cst_68 [1] : vector<8x128xi32> to vector<8xi32>
    %178 = vector.shape_cast %177 : vector<8xi32> to vector<8x1xi32>
    %179 = vector.broadcast %178 : vector<8x1xi32> to vector<8x128xi32>
    %180 = arith.cmpi eq, %10, %179 : vector<8x128xi32>
    %181 = arith.extui %180 : vector<8x128xi1> to vector<8x128xi32>
    %182 = arith.sitofp %181 : vector<8x128xi32> to vector<8x128xf32>
    %183 = arith.truncf %182 : vector<8x128xf32> to vector<8x128xbf16>
    %c3_69 = arith.constant 3 : index
    %c0_70 = arith.constant 0 : index
    %c0_71 = arith.constant 0 : index
    %184 = vector.load %arg4[%c3_69, %c0_70, %c0_71] : memref<4x128x128xbf16, #tpu.memory_space<vmem>>, vector<1x128x128xbf16>
    %185 = vector.shape_cast %184 : vector<1x128x128xbf16> to vector<128x128xbf16>
    %cst_72 = arith.constant dense<0.000000e+00> : vector<8x128xf32>
    %186 = tpu.matmul %183, %185, %cst_72 {dimension_numbers = #tpu.dot_dimension_numbers<[1], [0], [0], [1], [0, 0, 1, 1], [], []>} : vector<8x128xbf16>, vector<128x128xbf16>, vector<8x128xf32> -> vector<8x128xf32>
    %c3_73 = arith.constant 3 : index
    %c0_74 = arith.constant 0 : index
    %c0_75 = arith.constant 0 : index
    %187 = vector.load %arg5[%c3_73, %c0_74, %c0_75] : memref<4x128x128xbf16, #tpu.memory_space<vmem>>, vector<1x128x128xbf16>
    %188 = vector.shape_cast %187 : vector<1x128x128xbf16> to vector<128x128xbf16>
    %cst_76 = arith.constant dense<0.000000e+00> : vector<8x128xf32>
    %189 = tpu.matmul %183, %188, %cst_76 {dimension_numbers = #tpu.dot_dimension_numbers<[1], [0], [0], [1], [0, 0, 1, 1], [], []>} : vector<8x128xbf16>, vector<128x128xbf16>, vector<8x128xf32> -> vector<8x128xf32>
    %190 = arith.addf %186, %189 : vector<8x128xf32>
    %191 = arith.subf %190, %161 : vector<8x128xf32>
    %192 = arith.mulf %191, %191 : vector<8x128xf32>
    %193 = vector.broadcast %9 : vector<8x1xf32> to vector<8x128xf32>
    %194 = arith.mulf %192, %193 : vector<8x128xf32>
    %195 = vector.shape_cast %194 : vector<8x128xf32> to vector<1x8x128xf32>
    %cst_77 = arith.constant dense<0.000000e+00> : vector<1xf32>
    %196 = vector.multi_reduction <add>, %195, %cst_77 [1, 2] : vector<1x8x128xf32> to vector<1xf32>
    %197 = vector.shape_cast %196 : vector<1xf32> to vector<1x1x1xf32>
    %198 = vector.extract %197[0, 0, 0] : f32 from vector<1x1x1xf32>
    %c3_i32 = arith.constant 3 : i32
    %199 = vector.broadcast %c3_i32 : i32 to vector<4x128xi32>
    %200 = arith.cmpi eq, %11, %199 : vector<4x128xi32>
    %201 = vector.broadcast %198 : f32 to vector<4x128xf32>
    %202 = arith.select %200, %201, %153 : vector<4x128xi1>, vector<4x128xf32>
    %c3_i32_78 = arith.constant 3 : i32
    %203 = vector.broadcast %c3_i32_78 : i32 to vector<4x8xi32>
    %204 = arith.cmpi eq, %12, %203 : vector<4x8xi32>
    %205 = vector.shape_cast %177 : vector<8xi32> to vector<1x8xi32>
    %206 = vector.shape_cast %205 : vector<1x8xi32> to vector<1x8xi32>
    %207 = vector.broadcast %206 : vector<1x8xi32> to vector<4x8xi32>
    %208 = arith.select %204, %207, %159 : vector<4x8xi1>, vector<4x8xi32>
    %209 = arith.addf %160, %190 : vector<8x128xf32>
    %c0_79 = arith.constant 0 : index
    %c0_80 = arith.constant 0 : index
    %210 = vector.load %arg6[%c0_79, %c0_80] : memref<8x128xf32, #tpu.memory_space<vmem>>, vector<8x128xf32>
    tpu.vector_store %arg6[%c0_79, %c0_80], %209 {strides = array<i32>} : memref<8x128xf32, #tpu.memory_space<vmem>>, vector<8x128xf32>,
    %211 = vector.shape_cast %208 : vector<4x8xi32> to vector<1x4x8xi32>
    %c0_81 = arith.constant 0 : index
    %c0_82 = arith.constant 0 : index
    %c0_83 = arith.constant 0 : index
    %212 = vector.load %arg7[%c0_81, %c0_82, %c0_83] : memref<1x4x8xi32, #tpu.memory_space<vmem>>, vector<1x4x8xi32>
    tpu.vector_store %arg7[%c0_81, %c0_82, %c0_83], %211 {strides = array<i32>} : memref<1x4x8xi32, #tpu.memory_space<vmem>>, vector<1x4x8xi32>,
    %213 = vector.shape_cast %202 : vector<4x128xf32> to vector<1x4x128xf32>
    %c0_84 = arith.constant 0 : index
    %c0_85 = arith.constant 0 : index
    %c0_86 = arith.constant 0 : index
    %214 = vector.load %arg8[%c0_84, %c0_85, %c0_86] : memref<1x4x128xf32, #tpu.memory_space<vmem>>, vector<1x4x128xf32>
    tpu.vector_store %arg8[%c0_84, %c0_85, %c0_86], %213 {strides = array<i32>} : memref<1x4x128xf32, #tpu.memory_space<vmem>>, vector<1x4x128xf32>,
    return
  }
  func.func @transform_0(%arg0: i32) -> (i32, i32) {
    %c0_i32 = arith.constant 0 : i32
    %c0_i32_0 = arith.constant 0 : i32
    return %arg0, %c0_i32 : i32, i32
  }
  func.func @transform_1(%arg0: i32) -> (i32, i32, i32) {
    %c0_i32 = arith.constant 0 : i32
    %c0_i32_0 = arith.constant 0 : i32
    %c0_i32_1 = arith.constant 0 : i32
    %c0_i32_2 = arith.constant 0 : i32
    return %c0_i32, %c0_i32_0, %c0_i32_1 : i32, i32, i32
  }
  func.func @transform_2(%arg0: i32) -> (i32, i32) {
    %c0_i32 = arith.constant 0 : i32
    %c0_i32_0 = arith.constant 0 : i32
    %c0_i32_1 = arith.constant 0 : i32
    return %c0_i32, %c0_i32_0 : i32, i32
  }
  func.func @transform_3(%arg0: i32) -> (i32, i32, i32) {
    %c0_i32 = arith.constant 0 : i32
    %c0_i32_0 = arith.constant 0 : i32
    %c0_i32_1 = arith.constant 0 : i32
    %c0_i32_2 = arith.constant 0 : i32
    return %c0_i32, %c0_i32_0, %c0_i32_1 : i32, i32, i32
  }
  func.func @transform_4(%arg0: i32) -> (i32, i32, i32) {
    %c0_i32 = arith.constant 0 : i32
    %c0_i32_0 = arith.constant 0 : i32
    %c0_i32_1 = arith.constant 0 : i32
    %c0_i32_2 = arith.constant 0 : i32
    return %c0_i32, %c0_i32_0, %c0_i32_1 : i32, i32, i32
  }
  func.func @transform_5(%arg0: i32) -> (i32, i32) {
    %c0_i32 = arith.constant 0 : i32
    %c0_i32_0 = arith.constant 0 : i32
    return %arg0, %c0_i32 : i32, i32
  }
  func.func @transform_6(%arg0: i32) -> (i32, i32, i32) {
    %c0_i32 = arith.constant 0 : i32
    %c0_i32_0 = arith.constant 0 : i32
    %c0_i32_1 = arith.constant 0 : i32
    return %arg0, %c0_i32, %c0_i32_0 : i32, i32, i32
  }
  func.func @transform_7(%arg0: i32) -> (i32, i32, i32) {
    %c0_i32 = arith.constant 0 : i32
    %c0_i32_0 = arith.constant 0 : i32
    %c0_i32_1 = arith.constant 0 : i32
    return %arg0, %c0_i32, %c0_i32_0 : i32, i32, i32
  }
}

</mosaic_0001>

<llo_original>
// kernel: residual_quantize.1
$region0: #{residual_quantize.1}
  #allocation0 [shape = 'u32[]', space=smem, size = 0x4, offset = 0x4, fixed_abs, tag = 'smem constant byte address 0x4 - core index']
  #allocation1 [shape = 'u32[72,128]{1,0:T(1,128)}', space=vmem, size = 0x9000, scoped, tag = 'internal scratch']
  %s0 = inlined_call_operand.vmem [shape: f32[16,128], index: 0, kind: input, shape index: {}]
  %s1 = inlined_call_operand.vmem [shape: bf16[4,128,128], index: 1, kind: input, shape index: {}]
  %s2 = inlined_call_operand.vmem [shape: f32[4,128], index: 2, kind: input, shape index: {}]
  %s3 = inlined_call_operand.vmem [shape: bf16[4,128,128], index: 3, kind: input, shape index: {}]
  %s4 = inlined_call_operand.vmem [shape: bf16[4,128,128], index: 4, kind: input, shape index: {}]
  %s5 = inlined_call_operand.vmem [shape: f32[16,128], index: 5, kind: output, shape index: {0}]
  %s6 = inlined_call_operand.hbm [shape: s32[2,4,8], index: 6, kind: output, shape index: {1}]
  %s7 = inlined_call_operand.vmem [shape: f32[2,4,128], index: 7, kind: output, shape index: {2}]
  %8 = xla_tuple %s5, %s6, %s7
  %s9 = sld [smem:[#allocation0]]
  $region69: #{residual_quantize.1} parent=0
    _
  %s11 = ssub.s32 1, %s9
  %s12 = scalar_select 0, %s11, %s9
  $region1: #{residual_quantize.1} parent=0
    #allocation2 [shape = 'u8[4096]{0}', space=vmem, size = 0x1000, scoped, tag = 'output window, operand 1']
    #allocation3 [shape = 's32[2]{0}', space=sflag, size = 0x8, scoped, tag = 'scoped memory for residual_quantize.1']
    %13 = vsyncpa [#allocation3], 0
    %s14 = scalar_lea.sflag [#allocation3], 1
    %15 = vsyncpa %s14, 0
    loop: start=0, step=1, limit=4
    $region2: #{residual_quantize.1} parent=1 // loop_pre_header
      _
    $region3: #{residual_quantize.1} parent=1 // loop_header
      %s17 = sphi 0, %s21
      %p18 = scmp.ge.s32.totalorder %s17, 4
      %s27 = sphi 0, %s29
      %s30 = sphi 0, %s27
      %s31 = sphi 0, %s30
      %s47 = sphi 0, %s31
      %s51 = sphi 0, %s51
      %s53 = sphi 0, %s51
      %s54 = sphi 0, %s53
      %s68 = sphi 0, %s54
      %s72 = sphi 0, %s72
      %s74 = sphi 0, %s72
      %s75 = sphi 0, %s74
      %s89 = sphi 0, %s75
      %s93 = sphi 0, %s93
      %s95 = sphi 0, %s93
      %s96 = sphi 0, %s95
      %s110 = sphi 0, %s96
      %s114 = sphi 0, %s114
      %s116 = sphi 0, %s114
      %s117 = sphi 0, %s116
      %s131 = sphi 0, %s117
      %s137 = sphi 0, %s139
      %s140 = sphi 0, %s137
      %s141 = sphi 0, %s140
      %s157 = sphi 0, %s141
      %s163 = sphi 0, %s165
      %s166 = sphi 0, %s163
      %s167 = sphi 0, %s166
      %s183 = sphi 0, %s167
      %s189 = sphi 0, %s191
      %s192 = sphi 0, %s189
      %s193 = sphi 0, %s192
      %s209 = sphi 0, %s193
    $region4: #{residual_quantize.1} parent=1 // loop_header_branch
      %20 = sbr.rel (%p18) target = $region8
    $region5: #{residual_quantize.1} parent=1 // loop_body
      %s22 = ssub.s32 %s17, 1
      %s23 = ssub.s32 %s17, 2
      %s24 = sadd.s32 %s17, 1
      %s25 = ssub.s32 %s17, %s24
      %p26 = scmp.eq.s32.totalorder %s25, 0
      %s28 = sadd.s32 %s27, 1
      %s29 = scalar_select %p26, %s27, %s28
      %p32 = pneg %p26
      %p33 = scmp.eq.s32.totalorder %s17, 1
      %p34 = por %p32, %p33
      %p35 = scmp.ne.s32.totalorder %s27, %s30
      %p36 = scmp.eq.s32.totalorder %s17, 0
      %p37 = por %p35, %p36
      %p38 = scmp.ne.s32.totalorder %s27, %s30
      %p39 = scmp.eq.s32.totalorder %s22, 1
      %p40 = por %p38, %p39
      %p41 = scmp.ne.s32.totalorder %s30, %s31
      %p42 = scmp.eq.s32.totalorder %s22, 0
      %p43 = por %p41, %p42
      %p44 = scmp.ne.s32.totalorder %s30, %s31
      %p45 = scmp.eq.s32.totalorder %s23, 1
      %p46 = por %p44, %p45
      %p48 = scmp.ne.s32.totalorder %s31, %s47
      %p49 = scmp.eq.s32.totalorder %s23, 0
      %p50 = por %p48, %p49
      %s52 = sadd.s32 %s51, 1
      %p55 = scmp.eq.s32.totalorder %s17, 1
      %p56 = scmp.ne.s32.totalorder %s51, %s53
      %p57 = scmp.eq.s32.totalorder %s17, 0
      %p58 = por %p56, %p57
      %p59 = scmp.ne.s32.totalorder %s51, %s53
      %p60 = scmp.eq.s32.totalorder %s22, 1
      %p61 = por %p59, %p60
      %p62 = scmp.ne.s32.totalorder %s53, %s54
      %p63 = scmp.eq.s32.totalorder %s22, 0
      %p64 = por %p62, %p63
      %p65 = scmp.ne.s32.totalorder %s53, %s54
      %p66 = scmp.eq.s32.totalorder %s23, 1
      %p67 = por %p65, %p66
      %p69 = scmp.ne.s32.totalorder %s54, %s68
      %p70 = scmp.eq.s32.totalorder %s23, 0
      %p71 = por %p69, %p70
      %s73 = sadd.s32 %s72, 1
      %p76 = scmp.eq.s32.totalorder %s17, 1
      %p77 = scmp.ne.s32.totalorder %s72, %s74
      %p78 = scmp.eq.s32.totalorder %s17, 0
      %p79 = por %p77, %p78
      %p80 = scmp.ne.s32.totalorder %s72, %s74
      %p81 = scmp.eq.s32.totalorder %s22, 1
      %p82 = por %p80, %p81
      %p83 = scmp.ne.s32.totalorder %s74, %s75
      %p84 = scmp.eq.s32.totalorder %s22, 0
      %p85 = por %p83, %p84
      %p86 = scmp.ne.s32.totalorder %s74, %s75
      %p87 = scmp.eq.s32.totalorder %s23, 1
      %p88 = por %p86, %p87
      %p90 = scmp.ne.s32.totalorder %s75, %s89
      %p91 = scmp.eq.s32.totalorder %s23, 0
      %p92 = por %p90, %p91
      %s94 = sadd.s32 %s93, 1
      %p97 = scmp.eq.s32.totalorder %s17, 1
      %p98 = scmp.ne.s32.totalorder %s93, %s95
      %p99 = scmp.eq.s32.totalorder %s17, 0
      %p100 = por %p98, %p99
      %p101 = scmp.ne.s32.totalorder %s93, %s95
      %p102 = scmp.eq.s32.totalorder %s22, 1
      %p103 = por %p101, %p102
      %p104 = scmp.ne.s32.totalorder %s95, %s96
      %p105 = scmp.eq.s32.totalorder %s22, 0
      %p106 = por %p104, %p105
      %p107 = scmp.ne.s32.totalorder %s95, %s96
      %p108 = scmp.eq.s32.totalorder %s23, 1
      %p109 = por %p107, %p108
      %p111 = scmp.ne.s32.totalorder %s96, %s110
      %p112 = scmp.eq.s32.totalorder %s23, 0
      %p113 = por %p111, %p112
      %s115 = sadd.s32 %s114, 1
      %p118 = scmp.eq.s32.totalorder %s17, 1
      %p119 = scmp.ne.s32.totalorder %s114, %s116
      %p120 = scmp.eq.s32.totalorder %s17, 0
      %p121 = por %p119, %p120
      %p122 = scmp.ne.s32.totalorder %s114, %s116
      %p123 = scmp.eq.s32.totalorder %s22, 1
      %p124 = por %p122, %p123
      %p125 = scmp.ne.s32.totalorder %s116, %s117
      %p126 = scmp.eq.s32.totalorder %s22, 0
      %p127 = por %p125, %p126
      %p128 = scmp.ne.s32.totalorder %s116, %s117
      %p129 = scmp.eq.s32.totalorder %s23, 1
      %p130 = por %p128, %p129
      %p132 = scmp.ne.s32.totalorder %s117, %s131
      %p133 = scmp.eq.s32.totalorder %s23, 0
      %p134 = por %p132, %p133
      %s135 = ssub.s32 %s17, %s24
      %p136 = scmp.eq.s32.totalorder %s135, 0
      %s138 = sadd.s32 %s137, 1
      %s139 = scalar_select %p136, %s137, %s138
      %p142 = pneg %p136
      %p143 = scmp.eq.s32.totalorder %s17, 1
      %p144 = por %p142, %p143
      %p145 = scmp.ne.s32.totalorder %s137, %s140
      %p146 = scmp.eq.s32.totalorder %s17, 0
      %p147 = por %p145, %p146
      %p148 = scmp.ne.s32.totalorder %s137, %s140
      %p149 = scmp.eq.s32.totalorder %s22, 1
      %p150 = por %p148, %p149
      %p151 = scmp.ne.s32.totalorder %s140, %s141
      %p152 = scmp.eq.s32.totalorder %s22, 0
      %p153 = por %p151, %p152
      %p154 = scmp.ne.s32.totalorder %s140, %s141
      %p155 = scmp.eq.s32.totalorder %s23, 1
      %p156 = por %p154, %p155
      %p158 = scmp.ne.s32.totalorder %s141, %s157
      %p159 = scmp.eq.s32.totalorder %s23, 0
      %p160 = por %p158, %p159
      %s161 = ssub.s32 %s17, %s24
      %p162 = scmp.eq.s32.totalorder %s161, 0
      %s164 = sadd.s32 %s163, 1
      %s165 = scalar_select %p162, %s163, %s164
      %p168 = pneg %p162
      %p169 = scmp.eq.s32.totalorder %s17, 1
      %p170 = por %p168, %p169
      %p171 = scmp.ne.s32.totalorder %s163, %s166
      %p172 = scmp.eq.s32.totalorder %s17, 0
      %p173 = por %p171, %p172
      %p174 = scmp.ne.s32.totalorder %s163, %s166
      %p175 = scmp.eq.s32.totalorder %s22, 1
      %p176 = por %p174, %p175
      %p177 = scmp.ne.s32.totalorder %s166, %s167
      %p178 = scmp.eq.s32.totalorder %s22, 0
      %p179 = por %p177, %p178
      %p180 = scmp.ne.s32.totalorder %s166, %s167
      %p181 = scmp.eq.s32.totalorder %s23, 1
      %p182 = por %p180, %p181
      %p184 = scmp.ne.s32.totalorder %s167, %s183
      %p185 = scmp.eq.s32.totalorder %s23, 0
      %p186 = por %p184, %p185
      %s187 = ssub.s32 %s17, %s24
      %p188 = scmp.eq.s32.totalorder %s187, 0
      %s190 = sadd.s32 %s189, 1
      %s191 = scalar_select %p188, %s189, %s190
      %p194 = pneg %p188
      %p195 = scmp.eq.s32.totalorder %s17, 1
      %p196 = por %p194, %p195
      %p197 = scmp.ne.s32.totalorder %s189, %s192
      %p198 = scmp.eq.s32.totalorder %s17, 0
      %p199 = por %p197, %p198
      %p200 = scmp.ne.s32.totalorder %s189, %s192
      %p201 = scmp.eq.s32.totalorder %s22, 1
      %p202 = por %p200, %p201
      %p203 = scmp.ne.s32.totalorder %s192, %s193
      %p204 = scmp.eq.s32.totalorder %s22, 0
      %p205 = por %p203, %p204
      %p206 = scmp.ne.s32.totalorder %s192, %s193
      %p207 = scmp.eq.s32.totalorder %s23, 1
      %p208 = por %p206, %p207
      %p210 = scmp.ne.s32.totalorder %s193, %s209
      %p211 = scmp.eq.s32.totalorder %s23, 0
      %p212 = por %p210, %p211
      %p213 = scmp.le.s32.totalorder 1, %s17
      %p214 = scmp.lt.s32.totalorder %s17, 3
      %p215 = pnand %p213, %p214
      %p216 = pneg %p215
      // Predicated region
      $region9: #{residual_quantize.1} parent=5 // pred_check
        _
      $region10: #{residual_quantize.1} parent=5 // pred_check_branch
        %218 = sbr.rel (%p215) target = $region12
      $region11: #{residual_quantize.1} parent=5 // pred_region
        %s219 = ssub.s32 %s17, 1
        // Predicated region
        $region13: #{residual_quantize.1} parent=11 // pred_check
          %p220 = pneg %p64
        $region14: #{residual_quantize.1} parent=11 // pred_check_branch
          %222 = sbr.rel (%p220) target = $region16
        $region15: #{residual_quantize.1} parent=11 // pred_region
          _
        $region16: #{residual_quantize.1} parent=11 // pred_fallthru
          _
        // Predicated region
        $region17: #{residual_quantize.1} parent=11 // pred_check
          %p223 = pneg %p85
        $region18: #{residual_quantize.1} parent=11 // pred_check_branch
          %225 = sbr.rel (%p223) target = $region20
        $region19: #{residual_quantize.1} parent=11 // pred_region
          _
        $region20: #{residual_quantize.1} parent=11 // pred_fallthru
          _
        // Predicated region
        $region21: #{residual_quantize.1} parent=11 // pred_check
          %p226 = pneg %p106
        $region22: #{residual_quantize.1} parent=11 // pred_check_branch
          %228 = sbr.rel (%p226) target = $region24
        $region23: #{residual_quantize.1} parent=11 // pred_region
          _
        $region24: #{residual_quantize.1} parent=11 // pred_fallthru
          _
        // Predicated region
        $region25: #{residual_quantize.1} parent=11 // pred_check
          %p229 = pneg %p127
        $region26: #{residual_quantize.1} parent=11 // pred_check_branch
          %231 = sbr.rel (%p229) target = $region28
        $region27: #{residual_quantize.1} parent=11 // pred_region
          _
        $region28: #{residual_quantize.1} parent=11 // pred_fallthru
          _
      $region12: #{residual_quantize.1} parent=5 // pred_fallthru
        _
      %p232 = scmp.lt.s32.totalorder %s17, 2
      // Predicated region
      $region29: #{residual_quantize.1} parent=5 // pred_check
        %p233 = pneg %p232
      $region30: #{residual_quantize.1} parent=5 // pred_check_branch
        %235 = sbr.rel (%p233) target = $region32
      $region31: #{residual_quantize.1} parent=5 // pred_region
        // Predicated region
        $region33: #{residual_quantize.1} parent=31 // pred_check
          %p236 = pneg %p37
        $region34: #{residual_quantize.1} parent=31 // pred_check_branch
          %238 = sbr.rel (%p236) target = $region36
        $region35: #{residual_quantize.1} parent=31 // pred_region
          %p239 = scmp.lt.s32.totalorder %s17, 1
          %s240 = scalar_select %p239, %s17, 1
          %s241 = smul.addr %s240, 8
          %s242 = scalar_lea.vmem %s0, %s241
        $region36: #{residual_quantize.1} parent=31 // pred_fallthru
          _
      $region32: #{residual_quantize.1} parent=5 // pred_fallthru
        _
      %p243 = scmp.le.s32.totalorder 1, %s17
      %p244 = scmp.lt.s32.totalorder %s17, 3
      %p245 = pnand %p243, %p244
      %p246 = pneg %p245
      // Predicated region
      $region37: #{residual_quantize.1} parent=5 // pred_check
        _
      $region38: #{residual_quantize.1} parent=5 // pred_check_branch
        %248 = sbr.rel (%p245) target = $region40
      $region39: #{residual_quantize.1} parent=5 // pred_region
        %s249 = ssub.s32 %s17, 1
        %p250 = scmp.lt.s32.totalorder %s22, 1
        %s251 = scalar_select %p250, %s22, 1
        %s252 = smul.addr %s251, 8
        %s253 = scalar_lea.vmem %s0, %s252
        %p254 = pneg %p43
        %p255 = pneg %p40
        %p256 = pneg %p64
        %p257 = pneg %p61
        %p258 = pneg %p85
        %p259 = pneg %p82
        %p260 = pneg %p106
        %p261 = pneg %p103
        %p262 = pneg %p127
        %p263 = pneg %p124
        %p264 = pneg %p153
        %p265 = pneg %p150
        %p266 = scmp.lt.s32.totalorder %s22, 1
        %s267 = scalar_select %p266, %s22, 1
        %s268 = smul.addr %s267, 8
        %s269 = scalar_lea.vmem %s5, %s268
        %p270 = pneg %p179
        %p271 = pneg %p176
        %s272 = sand.u32 %s166, 1
        %s273 = scalar_lea.sflag [#allocation3], %s272
        %s274 = sand.u32 %s166, 1
        %s275 = smul.addr %s274, 4
        %s276 = scalar_lea.vmem [#allocation2], %s275
        %p277 = pneg %p205
        %p278 = pneg %p202
        %p279 = scmp.lt.s32.totalorder %s22, 1
        %s280 = scalar_select %p279, %s22, 1
        %s281 = smul.addr %s280, 4
        %s282 = scalar_lea.vmem %s7, %s281
        %p283 = scmp.lt.s32.totalorder %s22, 1
        %s284 = scalar_select %p283, %s22, 1
        %s285 = smul.addr %s284, 8
        %s286 = scalar_lea.vmem %s0, %s285
        %p287 = scmp.lt.s32.totalorder %s22, 1
        %s288 = scalar_select %p287, %s22, 1
        %s289 = smul.addr %s288, 8
        %s290 = scalar_lea.vmem %s5, %s289
        %p291 = scmp.lt.s32.totalorder %s22, 1
        %s292 = scalar_select %p291, %s22, 1
        %s293 = smul.addr %s292, 4
        %s294 = scalar_lea.vmem %s7, %s293
        %v295 = vld [vmem:[%s286] sm:$0xff]
        %v296 = vlaneseq
        %v297 = vshrl.u32 %v296, 7
        %s298 = smul.u32 %s22, 8
        %v299 = vstv %s298
        %v300 = vadd.s32 %v297, %v299
        %vm301 = vcmp.lt.s32.totalorder %v300, 16
        %v302 = vsel %vm301, 1, 0
        %v303 = vcvt.s32.f32 %v302
        %v304 = vlaneseq
        %v305 = vand.u32 %v304, 127
        %v306 = vld [vmem:[%s2] sm:$0x1]
        %v307 = vld [vmem:[%s1] sm:$0xf]
        %v308 = vld [vmem:[%s1 + $0x4] sm:$0xf]
        %v309 = vld [vmem:[%s1 + $0x8] sm:$0xf]
        %v310 = vld [vmem:[%s1 + $0xc] sm:$0xf]
        %v311 = vld [vmem:[%s1 + $0x10] sm:$0xf]
        %v312 = vld [vmem:[%s1 + $0x14] sm:$0xf]
        %v313 = vld [vmem:[%s1 + $0x18] sm:$0xf]
        %v314 = vld [vmem:[%s1 + $0x1c] sm:$0xf]
        %v315 = vld [vmem:[%s1 + $0x20] sm:$0xf]
        %v316 = vld [vmem:[%s1 + $0x24] sm:$0xf]
        %v317 = vld [vmem:[%s1 + $0x28] sm:$0xf]
        %v318 = vld [vmem:[%s1 + $0x2c] sm:$0xf]
        %v319 = vld [vmem:[%s1 + $0x30] sm:$0xf]
        %v320 = vld [vmem:[%s1 + $0x34] sm:$0xf]
        %v321 = vld [vmem:[%s1 + $0x38] sm:$0xf]
        %v322 = vld [vmem:[%s1 + $0x3c] sm:$0xf]
        %v323 = vpack.c.bf16 %v295, %v295
        %v340 = vunpack.c.l.b16 %v307
        %v341 = vunpack.c.l.b16 %v308
        %v342 = vunpack.c.l.b16 %v309
        %v343 = vunpack.c.l.b16 %v310
        %v344 = vunpack.c.l.b16 %v311
        %v345 = vunpack.c.l.b16 %v312
        %v346 = vunpack.c.l.b16 %v313
        %v347 = vunpack.c.l.b16 %v314
        %v348 = vunpack.c.l.b16 %v315
        %v349 = vunpack.c.l.b16 %v316
        %v350 = vunpack.c.l.b16 %v317
        %v351 = vunpack.c.l.b16 %v318
        %v352 = vunpack.c.l.b16 %v319
        %v353 = vunpack.c.l.b16 %v320
        %v354 = vunpack.c.l.b16 %v321
        %v355 = vunpack.c.l.b16 %v322
        %v356 = vpack.c.b16 %v341, %v340
        %v357 = vpack.c.b16 %v343, %v342
        %v358 = vpack.c.b16 %v345, %v344
        %v359 = vpack.c.b16 %v347, %v346
        %v360 = vpack.c.b16 %v349, %v348
        %v361 = vpack.c.b16 %v351, %v350
        %v362 = vpack.c.b16 %v353, %v352
        %v363 = vpack.c.b16 %v355, %v354
        %372 = vmatpush.bf16.msra.mxu0 %v363
        %373 = vmatpush.bf16.msra.mxu0 %v362
        %374 = vmatpush.bf16.msra.mxu0 %v361
        %375 = vmatpush.bf16.msra.mxu0 %v360
        %376 = vmatpush.bf16.msra.mxu0 %v359
        %377 = vmatpush.bf16.msra.mxu0 %v358
        %378 = vmatpush.bf16.msra.mxu0 %v357
        %379 = vmatpush.bf16.msra.mxu0 %v356
        %380 = vmatmul.bf16.gmra.mxu0 %v323
        %v381 = vpop.f32.mrf.mxu0
        %v382 = vadd.f32 0.0, %v381
        %v383 = vpop.f32.mrf.mxu0
        %384 = vdwg.mxu0
        %v385 = vmul.f32 %v306, 0.5
        %v386 = vperm.slane %v385, 0
        %v387 = vsub.f32 %v382, %v386
        %388 = vmax.xlane.f32.xlu0 %v387
        %v389 = vpop.xlane.xlu0 %388
        %vm390 = vcmp.eq.f32.partialorder %v387, %v389
        %v391 = vsel %vm390, %v305, 128
        %v392 = vand.u32 %v391, 65535
        %v393 = vshra.s32 %v391, 16
        %v394 = vcvt.s32.f32 %v392
        %v395 = vcvt.s32.f32 %v393
        %396 = vmin.xlane.f32.xlu0 %v395
        %v397 = vpop.xlane.xlu0 %396
        %vm398 = vcmp.eq.f32.partialorder %v395, %v397
        %v399 = vsel %vm398, %v394, inf
        %400 = vmin.xlane.f32.xlu0 %v399
        %v401 = vpop.xlane.xlu0 %400
        %v402 = vcvt.f32.s32 %v401
        %v403 = vcvt.f32.s32 %v397
        %v404 = vshll.u32 %v403, 16
        %v405 = vadd.s32 %v404, %v402
        %vm406 = vcmp.eq.s32.totalorder %v305, %v405
        %v407 = vsel %vm406, 1, 0
        %v408 = vcvt.s32.f32 %v407
        %v409 = vpack.c.bf16 %v408, %v408
        %v410 = vld [vmem:[%s3] sm:$0xf]
        %v411 = vld [vmem:[%s3 + $0x4] sm:$0xf]
        %v412 = vld [vmem:[%s3 + $0x8] sm:$0xf]
        %v413 = vld [vmem:[%s3 + $0xc] sm:$0xf]
        %v414 = vld [vmem:[%s3 + $0x10] sm:$0xf]
        %v415 = vld [vmem:[%s3 + $0x14] sm:$0xf]
        %v416 = vld [vmem:[%s3 + $0x18] sm:$0xf]
        %v417 = vld [vmem:[%s3 + $0x1c] sm:$0xf]
        %v418 = vld [vmem:[%s3 + $0x20] sm:$0xf]
        %v419 = vld [vmem:[%s3 + $0x24] sm:$0xf]
        %v420 = vld [vmem:[%s3 + $0x28] sm:$0xf]
        %v421 = vld [vmem:[%s3 + $0x2c] sm:$0xf]
        %v422 = vld [vmem:[%s3 + $0x30] sm:$0xf]
        %v423 = vld [vmem:[%s3 + $0x34] sm:$0xf]
        %v424 = vld [vmem:[%s3 + $0x38] sm:$0xf]
        %v425 = vld [vmem:[%s3 + $0x3c] sm:$0xf]
        %v426 = vld [vmem:[%s4] sm:$0xf]
        %v427 = vld [vmem:[%s4 + $0x4] sm:$0xf]
        %v428 = vld [vmem:[%s4 + $0x8] sm:$0xf]
        %v429 = vld [vmem:[%s4 + $0xc] sm:$0xf]
        %v430 = vld [vmem:[%s4 + $0x10] sm:$0xf]
        %v431 = vld [vmem:[%s4 + $0x14] sm:$0xf]
        %v432 = vld [vmem:[%s4 + $0x18] sm:$0xf]
        %v433 = vld [vmem:[%s4 + $0x1c] sm:$0xf]
        %v434 = vld [vmem:[%s4 + $0x20] sm:$0xf]
        %v435 = vld [vmem:[%s4 + $0x24] sm:$0xf]
        %v436 = vld [vmem:[%s4 + $0x28] sm:$0xf]
        %v437 = vld [vmem:[%s4 + $0x2c] sm:$0xf]
        %v438 = vld [vmem:[%s4 + $0x30] sm:$0xf]
        %v439 = vld [vmem:[%s4 + $0x34] sm:$0xf]
        %v440 = vld [vmem:[%s4 + $0x38] sm:$0xf]
        %v441 = vld [vmem:[%s4 + $0x3c] sm:$0xf]
        %v458 = vunpack.c.l.b16 %v426
        %v459 = vunpack.c.l.b16 %v427
        %v460 = vunpack.c.l.b16 %v428
        %v461 = vunpack.c.l.b16 %v429
        %v462 = vunpack.c.l.b16 %v430
        %v463 = vunpack.c.l.b16 %v431
        %v464 = vunpack.c.l.b16 %v432
        %v465 = vunpack.c.l.b16 %v433
        %v466 = vunpack.c.l.b16 %v434
        %v467 = vunpack.c.l.b16 %v435
        %v468 = vunpack.c.l.b16 %v436
        %v469 = vunpack.c.l.b16 %v437
        %v470 = vunpack.c.l.b16 %v438
        %v471 = vunpack.c.l.b16 %v439
        %v472 = vunpack.c.l.b16 %v440
        %v473 = vunpack.c.l.b16 %v441
        %v474 = vpack.c.b16 %v459, %v458
        %v475 = vpack.c.b16 %v461, %v460
        %v476 = vpack.c.b16 %v463, %v462
        %v477 = vpack.c.b16 %v465, %v464
        %v478 = vpack.c.b16 %v467, %v466
        %v479 = vpack.c.b16 %v469, %v468
        %v480 = vpack.c.b16 %v471, %v470
        %v481 = vpack.c.b16 %v473, %v472
        %490 = vmatpush.bf16.msra.mxu0 %v481
        %491 = vmatpush.bf16.msra.mxu0 %v480
        %492 = vmatpush.bf16.msra.mxu0 %v479
        %493 = vmatpush.bf16.msra.mxu0 %v478
        %494 = vmatpush.bf16.msra.mxu0 %v477
        %495 = vmatpush.bf16.msra.mxu0 %v476
        %496 = vmatpush.bf16.msra.mxu0 %v475
        %497 = vmatpush.bf16.msra.mxu0 %v474
        %498 = vmatmul.bf16.gmra.mxu0 %v409
        %v499 = vpop.f32.mrf.mxu0
        %v500 = vadd.f32 0.0, %v499
        %v501 = vpop.f32.mrf.mxu0
        %502 = vdwg.mxu0
        %v519 = vunpack.c.l.b16 %v410
        %v520 = vunpack.c.l.b16 %v411
        %v521 = vunpack.c.l.b16 %v412
        %v522 = vunpack.c.l.b16 %v413
        %v523 = vunpack.c.l.b16 %v414
        %v524 = vunpack.c.l.b16 %v415
        %v525 = vunpack.c.l.b16 %v416
        %v526 = vunpack.c.l.b16 %v417
        %v527 = vunpack.c.l.b16 %v418
        %v528 = vunpack.c.l.b16 %v419
        %v529 = vunpack.c.l.b16 %v420
        %v530 = vunpack.c.l.b16 %v421
        %v531 = vunpack.c.l.b16 %v422
        %v532 = vunpack.c.l.b16 %v423
        %v533 = vunpack.c.l.b16 %v424
        %v534 = vunpack.c.l.b16 %v425
        %v535 = vpack.c.b16 %v520, %v519
        %v536 = vpack.c.b16 %v522, %v521
        %v537 = vpack.c.b16 %v524, %v523
        %v538 = vpack.c.b16 %v526, %v525
        %v539 = vpack.c.b16 %v528, %v527
        %v540 = vpack.c.b16 %v530, %v529
        %v541 = vpack.c.b16 %v532, %v531
        %v542 = vpack.c.b16 %v534, %v533
        %551 = vmatpush.bf16.msra.mxu0 %v542
        %552 = vmatpush.bf16.msra.mxu0 %v541
        %553 = vmatpush.bf16.msra.mxu0 %v540
        %554 = vmatpush.bf16.msra.mxu0 %v539
        %555 = vmatpush.bf16.msra.mxu0 %v538
        %556 = vmatpush.bf16.msra.mxu0 %v537
        %557 = vmatpush.bf16.msra.mxu0 %v536
        %558 = vmatpush.bf16.msra.mxu0 %v535
        %559 = vmatmul.bf16.gmra.mxu0 %v409
        %v560 = vpop.f32.mrf.mxu0
        %v561 = vadd.f32 %v500, %v560
        %v562 = vpop.f32.mrf.mxu0
        %563 = vdwg.mxu0
        %v564 = vsub.f32 %v561, %v295
        %v565 = vmul.f32 %v564, %v564
        %v566 = vmul.f32 %v565, %v303
        %567 = vadd.xlane.f32.xlu0 %v566
        %v568 = vpop.xlane.xlu0 %567
        %v569 = vrot.slane %v568, 4
        %v570 = vadd.f32 %v568, %v569
        %v571 = vrot.slane %v570, 2
        %v572 = vadd.f32 %v570, %v571
        %v573 = vrot.slane %v572, 1
        %v574 = vadd.f32 %v572, %v573
        %s575 = vtos %v574
        %vm576 = vcmp.eq.s32.totalorder %v297, 0
        %v577 = vstv %s575
        %v578 = vsel %vm576, %v577, 0.0
        %v579 = vperm.slane %v405, %v305
        %vm580 = vcmask 1042434
        %v581 = vsel %vm580, %v579, %v579
        %vm582 = vcmask 1043459
        %v583 = vsel %vm582, %v579, %v581
        %v584 = vsel %vm576, %v583, 0
        %v585 = vadd.f32 %v561, 0.0
        %v586 = vsub.f32 %v295, %v561
        %v587 = vld [vmem:[%s2 + $0x1] sm:$0x1]
        %s588 = scalar_lea.vmem %s1, 64
        %v589 = vld [vmem:[%s588] sm:$0xf]
        %v590 = vld [vmem:[%s588 + $0x4] sm:$0xf]
        %v591 = vld [vmem:[%s588 + $0x8] sm:$0xf]
        %v592 = vld [vmem:[%s588 + $0xc] sm:$0xf]
        %v593 = vld [vmem:[%s588 + $0x10] sm:$0xf]
        %v594 = vld [vmem:[%s588 + $0x14] sm:$0xf]
        %v595 = vld [vmem:[%s588 + $0x18] sm:$0xf]
        %v596 = vld [vmem:[%s588 + $0x1c] sm:$0xf]
        %v597 = vld [vmem:[%s588 + $0x20] sm:$0xf]
        %v598 = vld [vmem:[%s588 + $0x24] sm:$0xf]
        %v599 = vld [vmem:[%s588 + $0x28] sm:$0xf]
        %v600 = vld [vmem:[%s588 + $0x2c] sm:$0xf]
        %v601 = vld [vmem:[%s588 + $0x30] sm:$0xf]
        %v602 = vld [vmem:[%s588 + $0x34] sm:$0xf]
        %v603 = vld [vmem:[%s588 + $0x38] sm:$0xf]
        %v604 = vld [vmem:[%s588 + $0x3c] sm:$0xf]
        %v605 = vpack.c.bf16 %v586, %v586
        %v622 = vunpack.c.l.b16 %v589
        %v623 = vunpack.c.l.b16 %v590
        %v624 = vunpack.c.l.b16 %v591
        %v625 = vunpack.c.l.b16 %v592
        %v626 = vunpack.c.l.b16 %v593
        %v627 = vunpack.c.l.b16 %v594
        %v628 = vunpack.c.l.b16 %v595
        %v629 = vunpack.c.l.b16 %v596
        %v630 = vunpack.c.l.b16 %v597
        %v631 = vunpack.c.l.b16 %v598
        %v632 = vunpack.c.l.b16 %v599
        %v633 = vunpack.c.l.b16 %v600
        %v634 = vunpack.c.l.b16 %v601
        %v635 = vunpack.c.l.b16 %v602
        %v636 = vunpack.c.l.b16 %v603
        %v637 = vunpack.c.l.b16 %v604
        %v638 = vpack.c.b16 %v623, %v622
        %v639 = vpack.c.b16 %v625, %v624
        %v640 = vpack.c.b16 %v627, %v626
        %v641 = vpack.c.b16 %v629, %v628
        %v642 = vpack.c.b16 %v631, %v630
        %v643 = vpack.c.b16 %v633, %v632
        %v644 = vpack.c.b16 %v635, %v634
        %v645 = vpack.c.b16 %v637, %v636
        %654 = vmatpush.bf16.msra.mxu0 %v645
        %655 = vmatpush.bf16.msra.mxu0 %v644
        %656 = vmatpush.bf16.msra.mxu0 %v643
        %657 = vmatpush.bf16.msra.mxu0 %v642
        %658 = vmatpush.bf16.msra.mxu0 %v641
        %659 = vmatpush.bf16.msra.mxu0 %v640
        %660 = vmatpush.bf16.msra.mxu0 %v639
        %661 = vmatpush.bf16.msra.mxu0 %v638
        %662 = vmatmul.bf16.gmra.mxu0 %v605
        %v663 = vpop.f32.mrf.mxu0
        %v664 = vadd.f32 0.0, %v663
        %v665 = vpop.f32.mrf.mxu0
        %666 = vdwg.mxu0
        %v667 = vmul.f32 %v587, 0.5
        %v668 = vperm.slane %v667, 0
        %v669 = vsub.f32 %v664, %v668
        %670 = vmax.xlane.f32.xlu0 %v669
        %v671 = vpop.xlane.xlu0 %670
        %vm672 = vcmp.eq.f32.partialorder %v669, %v671
        %v673 = vsel %vm672, %v305, 128
        %v674 = vand.u32 %v673, 65535
        %v675 = vshra.s32 %v673, 16
        %v676 = vcvt.s32.f32 %v674
        %v677 = vcvt.s32.f32 %v675
        %678 = vmin.xlane.f32.xlu0 %v677
        %v679 = vpop.xlane.xlu0 %678
        %vm680 = vcmp.eq.f32.partialorder %v677, %v679
        %v681 = vsel %vm680, %v676, inf
        %682 = vmin.xlane.f32.xlu0 %v681
        %v683 = vpop.xlane.xlu0 %682
        %v684 = vcvt.f32.s32 %v683
        %v685 = vcvt.f32.s32 %v679
        %v686 = vshll.u32 %v685, 16
        %v687 = vadd.s32 %v686, %v684
        %vm688 = vcmp.eq.s32.totalorder %v305, %v687
        %v689 = vsel %vm688, 1, 0
        %v690 = vcvt.s32.f32 %v689
        %v691 = vpack.c.bf16 %v690, %v690
        %s692 = scalar_lea.vmem %s3, 64
        %v693 = vld [vmem:[%s692] sm:$0xf]
        %v694 = vld [vmem:[%s692 + $0x4] sm:$0xf]
        %v695 = vld [vmem:[%s692 + $0x8] sm:$0xf]
        %v696 = vld [vmem:[%s692 + $0xc] sm:$0xf]
        %v697 = vld [vmem:[%s692 + $0x10] sm:$0xf]
        %v698 = vld [vmem:[%s692 + $0x14] sm:$0xf]
        %v699 = vld [vmem:[%s692 + $0x18] sm:$0xf]
        %v700 = vld [vmem:[%s692 + $0x1c] sm:$0xf]
        %v701 = vld [vmem:[%s692 + $0x20] sm:$0xf]
        %v702 = vld [vmem:[%s692 + $0x24] sm:$0xf]
        %v703 = vld [vmem:[%s692 + $0x28] sm:$0xf]
        %v704 = vld [vmem:[%s692 + $0x2c] sm:$0xf]
        %v705 = vld [vmem:[%s692 + $0x30] sm:$0xf]
        %v706 = vld [vmem:[%s692 + $0x34] sm:$0xf]
        %v707 = vld [vmem:[%s692 + $0x38] sm:$0xf]
        %v708 = vld [vmem:[%s692 + $0x3c] sm:$0xf]
        %s709 = scalar_lea.vmem %s4, 64
        %v710 = vld [vmem:[%s709] sm:$0xf]
        %v711 = vld [vmem:[%s709 + $0x4] sm:$0xf]
        %v712 = vld [vmem:[%s709 + $0x8] sm:$0xf]
        %v713 = vld [vmem:[%s709 + $0xc] sm:$0xf]
        %v714 = vld [vmem:[%s709 + $0x10] sm:$0xf]
        %v715 = vld [vmem:[%s709 + $0x14] sm:$0xf]
        %v716 = vld [vmem:[%s709 + $0x18] sm:$0xf]
        %v717 = vld [vmem:[%s709 + $0x1c] sm:$0xf]
        %v718 = vld [vmem:[%s709 + $0x20] sm:$0xf]
        %v719 = vld [vmem:[%s709 + $0x24] sm:$0xf]
        %v720 = vld [vmem:[%s709 + $0x28] sm:$0xf]
        %v721 = vld [vmem:[%s709 + $0x2c] sm:$0xf]
        %v722 = vld [vmem:[%s709 + $0x30] sm:$0xf]
        %v723 = vld [vmem:[%s709 + $0x34] sm:$0xf]
        %v724 = vld [vmem:[%s709 + $0x38] sm:$0xf]
        %v725 = vld [vmem:[%s709 + $0x3c] sm:$0xf]
        %v742 = vunpack.c.l.b16 %v710
        %v743 = vunpack.c.l.b16 %v711
        %v744 = vunpack.c.l.b16 %v712
        %v745 = vunpack.c.l.b16 %v713
        %v746 = vunpack.c.l.b16 %v714
        %v747 = vunpack.c.l.b16 %v715
        %v748 = vunpack.c.l.b16 %v716
        %v749 = vunpack.c.l.b16 %v717
        %v750 = vunpack.c.l.b16 %v718
        %v751 = vunpack.c.l.b16 %v719
        %v752 = vunpack.c.l.b16 %v720
        %v753 = vunpack.c.l.b16 %v721
        %v754 = vunpack.c.l.b16 %v722
        %v755 = vunpack.c.l.b16 %v723
        %v756 = vunpack.c.l.b16 %v724
        %v757 = vunpack.c.l.b16 %v725
        %v758 = vpack.c.b16 %v743, %v742
        %v759 = vpack.c.b16 %v745, %v744
        %v760 = vpack.c.b16 %v747, %v746
        %v761 = vpack.c.b16 %v749, %v748
        %v762 = vpack.c.b16 %v751, %v750
        %v763 = vpack.c.b16 %v753, %v752
        %v764 = vpack.c.b16 %v755, %v754
        %v765 = vpack.c.b16 %v757, %v756
        %774 = vmatpush.bf16.msra.mxu0 %v765
        %775 = vmatpush.bf16.msra.mxu0 %v764
        %776 = vmatpush.bf16.msra.mxu0 %v763
        %777 = vmatpush.bf16.msra.mxu0 %v762
        %778 = vmatpush.bf16.msra.mxu0 %v761
        %779 = vmatpush.bf16.msra.mxu0 %v760
        %780 = vmatpush.bf16.msra.mxu0 %v759
        %781 = vmatpush.bf16.msra.mxu0 %v758
        %782 = vmatmul.bf16.gmra.mxu0 %v691
        %v783 = vpop.f32.mrf.mxu0
        %v784 = vadd.f32 0.0, %v783
        %v785 = vpop.f32.mrf.mxu0
        %786 = vdwg.mxu0
        %v803 = vunpack.c.l.b16 %v693
        %v804 = vunpack.c.l.b16 %v694
        %v805 = vunpack.c.l.b16 %v695
        %v806 = vunpack.c.l.b16 %v696
        %v807 = vunpack.c.l.b16 %v697
        %v808 = vunpack.c.l.b16 %v698
        %v809 = vunpack.c.l.b16 %v699
        %v810 = vunpack.c.l.b16 %v700
        %v811 = vunpack.c.l.b16 %v701
        %v812 = vunpack.c.l.b16 %v702
        %v813 = vunpack.c.l.b16 %v703
        %v814 = vunpack.c.l.b16 %v704
        %v815 = vunpack.c.l.b16 %v705
        %v816 = vunpack.c.l.b16 %v706
        %v817 = vunpack.c.l.b16 %v707
        %v818 = vunpack.c.l.b16 %v708
        %v819 = vpack.c.b16 %v804, %v803
        %v820 = vpack.c.b16 %v806, %v805
        %v821 = vpack.c.b16 %v808, %v807
        %v822 = vpack.c.b16 %v810, %v809
        %v823 = vpack.c.b16 %v812, %v811
        %v824 = vpack.c.b16 %v814, %v813
        %v825 = vpack.c.b16 %v816, %v815
        %v826 = vpack.c.b16 %v818, %v817
        %835 = vmatpush.bf16.msra.mxu0 %v826
        %836 = vmatpush.bf16.msra.mxu0 %v825
        %837 = vmatpush.bf16.msra.mxu0 %v824
        %838 = vmatpush.bf16.msra.mxu0 %v823
        %839 = vmatpush.bf16.msra.mxu0 %v822
        %840 = vmatpush.bf16.msra.mxu0 %v821
        %841 = vmatpush.bf16.msra.mxu0 %v820
        %842 = vmatpush.bf16.msra.mxu0 %v819
        %843 = vmatmul.bf16.gmra.mxu0 %v691
        %v844 = vpop.f32.mrf.mxu0
        %v845 = vadd.f32 %v784, %v844
        %v846 = vpop.f32.mrf.mxu0
        %847 = vdwg.mxu0
        %v848 = vsub.f32 %v845, %v586
        %v849 = vmul.f32 %v848, %v848
        %v850 = vmul.f32 %v849, %v303
        %851 = vadd.xlane.f32.xlu0 %v850
        %v852 = vpop.xlane.xlu0 %851
        %v853 = vrot.slane %v852, 4
        %v854 = vadd.f32 %v852, %v853
        %v855 = vrot.slane %v854, 2
        %v856 = vadd.f32 %v854, %v855
        %v857 = vrot.slane %v856, 1
        %v858 = vadd.f32 %v856, %v857
        %s859 = vtos %v858
        %vm860 = vcmp.eq.s32.totalorder %v297, 1
        %v861 = vstv %s859
        %v862 = vsel %vm860, %v861, %v578
        %v863 = vperm.slane %v687, %v305
        %v864 = vsel %vm580, %v863, %v863
        %v865 = vsel %vm582, %v863, %v864
        %v866 = vsel %vm860, %v865, %v584
        %v867 = vadd.f32 %v585, %v845
        %v868 = vsub.f32 %v586, %v845
        %v869 = vld [vmem:[%s2 + $0x2] sm:$0x1]
        %s870 = scalar_lea.vmem %s1, 128
        %v871 = vld [vmem:[%s870] sm:$0xf]
        %v872 = vld [vmem:[%s870 + $0x4] sm:$0xf]
        %v873 = vld [vmem:[%s870 + $0x8] sm:$0xf]
        %v874 = vld [vmem:[%s870 + $0xc] sm:$0xf]
        %v875 = vld [vmem:[%s870 + $0x10] sm:$0xf]
        %v876 = vld [vmem:[%s870 + $0x14] sm:$0xf]
        %v877 = vld [vmem:[%s870 + $0x18] sm:$0xf]
        %v878 = vld [vmem:[%s870 + $0x1c] sm:$0xf]
        %v879 = vld [vmem:[%s870 + $0x20] sm:$0xf]
        %v880 = vld [vmem:[%s870 + $0x24] sm:$0xf]
        %v881 = vld [vmem:[%s870 + $0x28] sm:$0xf]
        %v882 = vld [vmem:[%s870 + $0x2c] sm:$0xf]
        %v883 = vld [vmem:[%s870 + $0x30] sm:$0xf]
        %v884 = vld [vmem:[%s870 + $0x34] sm:$0xf]
        %v885 = vld [vmem:[%s870 + $0x38] sm:$0xf]
        %v886 = vld [vmem:[%s870 + $0x3c] sm:$0xf]
        %v887 = vpack.c.bf16 %v868, %v868
        %v904 = vunpack.c.l.b16 %v871
        %v905 = vunpack.c.l.b16 %v872
        %v906 = vunpack.c.l.b16 %v873
        %v907 = vunpack.c.l.b16 %v874
        %v908 = vunpack.c.l.b16 %v875
        %v909 = vunpack.c.l.b16 %v876
        %v910 = vunpack.c.l.b16 %v877
        %v911 = vunpack.c.l.b16 %v878
        %v912 = vunpack.c.l.b16 %v879
        %v913 = vunpack.c.l.b16 %v880
        %v914 = vunpack.c.l.b16 %v881
        %v915 = vunpack.c.l.b16 %v882
        %v916 = vunpack.c.l.b16 %v883
        %v917 = vunpack.c.l.b16 %v884
        %v918 = vunpack.c.l.b16 %v885
        %v919 = vunpack.c.l.b16 %v886
        %v920 = vpack.c.b16 %v905, %v904
        %v921 = vpack.c.b16 %v907, %v906
        %v922 = vpack.c.b16 %v909, %v908
        %v923 = vpack.c.b16 %v911, %v910
        %v924 = vpack.c.b16 %v913, %v912
        %v925 = vpack.c.b16 %v915, %v914
        %v926 = vpack.c.b16 %v917, %v916
        %v927 = vpack.c.b16 %v919, %v918
        %936 = vmatpush.bf16.msra.mxu0 %v927
        %937 = vmatpush.bf16.msra.mxu0 %v926
        %938 = vmatpush.bf16.msra.mxu0 %v925
        %939 = vmatpush.bf16.msra.mxu0 %v924
        %940 = vmatpush.bf16.msra.mxu0 %v923
        %941 = vmatpush.bf16.msra.mxu0 %v922
        %942 = vmatpush.bf16.msra.mxu0 %v921
        %943 = vmatpush.bf16.msra.mxu0 %v920
        %944 = vmatmul.bf16.gmra.mxu0 %v887
        %v945 = vpop.f32.mrf.mxu0
        %v946 = vadd.f32 0.0, %v945
        %v947 = vpop.f32.mrf.mxu0
        %948 = vdwg.mxu0
        %v949 = vmul.f32 %v869, 0.5
        %v950 = vperm.slane %v949, 0
        %v951 = vsub.f32 %v946, %v950
        %952 = vmax.xlane.f32.xlu0 %v951
        %v953 = vpop.xlane.xlu0 %952
        %vm954 = vcmp.eq.f32.partialorder %v951, %v953
        %v955 = vsel %vm954, %v305, 128
        %v956 = vand.u32 %v955, 65535
        %v957 = vshra.s32 %v955, 16
        %v958 = vcvt.s32.f32 %v956
        %v959 = vcvt.s32.f32 %v957
        %960 = vmin.xlane.f32.xlu0 %v959
        %v961 = vpop.xlane.xlu0 %960
        %vm962 = vcmp.eq.f32.partialorder %v959, %v961
        %v963 = vsel %vm962, %v958, inf
        %964 = vmin.xlane.f32.xlu0 %v963
        %v965 = vpop.xlane.xlu0 %964
        %v966 = vcvt.f32.s32 %v965
        %v967 = vcvt.f32.s32 %v961
        %v968 = vshll.u32 %v967, 16
        %v969 = vadd.s32 %v968, %v966
        %vm970 = vcmp.eq.s32.totalorder %v305, %v969
        %v971 = vsel %vm970, 1, 0
        %v972 = vcvt.s32.f32 %v971
        %v973 = vpack.c.bf16 %v972, %v972
        %s974 = scalar_lea.vmem %s3, 128
        %v975 = vld [vmem:[%s974] sm:$0xf]
        %v976 = vld [vmem:[%s974 + $0x4] sm:$0xf]
        %v977 = vld [vmem:[%s974 + $0x8] sm:$0xf]
        %v978 = vld [vmem:[%s974 + $0xc] sm:$0xf]
        %v979 = vld [vmem:[%s974 + $0x10] sm:$0xf]
        %v980 = vld [vmem:[%s974 + $0x14] sm:$0xf]
        %v981 = vld [vmem:[%s974 + $0x18] sm:$0xf]
        %v982 = vld [vmem:[%s974 + $0x1c] sm:$0xf]
        %v983 = vld [vmem:[%s974 + $0x20] sm:$0xf]
        %v984 = vld [vmem:[%s974 + $0x24] sm:$0xf]
        %v985 = vld [vmem:[%s974 + $0x28] sm:$0xf]
        %v986 = vld [vmem:[%s974 + $0x2c] sm:$0xf]
        %v987 = vld [vmem:[%s974 + $0x30] sm:$0xf]
        %v988 = vld [vmem:[%s974 + $0x34] sm:$0xf]
        %v989 = vld [vmem:[%s974 + $0x38] sm:$0xf]
        %v990 = vld [vmem:[%s974 + $0x3c] sm:$0xf]
        %s991 = scalar_lea.vmem %s4, 128
        %v992 = vld [vmem:[%s991] sm:$0xf]
        %v993 = vld [vmem:[%s991 + $0x4] sm:$0xf]
        %v994 = vld [vmem:[%s991 + $0x8] sm:$0xf]
        %v995 = vld [vmem:[%s991 + $0xc] sm:$0xf]
        %v996 = vld [vmem:[%s991 + $0x10] sm:$0xf]
        %v997 = vld [vmem:[%s991 + $0x14] sm:$0xf]
        %v998 = vld [vmem:[%s991 + $0x18] sm:$0xf]
        %v999 = vld [vmem:[%s991 + $0x1c] sm:$0xf]
        %v1000 = vld [vmem:[%s991 + $0x20] sm:$0xf]
        %v1001 = vld [vmem:[%s991 + $0x24] sm:$0xf]
        %v1002 = vld [vmem:[%s991 + $0x28] sm:$0xf]
        %v1003 = vld [vmem:[%s991 + $0x2c] sm:$0xf]
        %v1004 = vld [vmem:[%s991 + $0x30] sm:$0xf]
        %v1005 = vld [vmem:[%s991 + $0x34] sm:$0xf]
        %v1006 = vld [vmem:[%s991 + $0x38] sm:$0xf]
        %v1007 = vld [vmem:[%s991 + $0x3c] sm:$0xf]
        %v1024 = vunpack.c.l.b16 %v992
        %v1025 = vunpack.c.l.b16 %v993
        %v1026 = vunpack.c.l.b16 %v994
        %v1027 = vunpack.c.l.b16 %v995
        %v1028 = vunpack.c.l.b16 %v996
        %v1029 = vunpack.c.l.b16 %v997
        %v1030 = vunpack.c.l.b16 %v998
        %v1031 = vunpack.c.l.b16 %v999
        %v1032 = vunpack.c.l.b16 %v1000
        %v1033 = vunpack.c.l.b16 %v1001
        %v1034 = vunpack.c.l.b16 %v1002
        %v1035 = vunpack.c.l.b16 %v1003
        %v1036 = vunpack.c.l.b16 %v1004
        %v1037 = vunpack.c.l.b16 %v1005
        %v1038 = vunpack.c.l.b16 %v1006
        %v1039 = vunpack.c.l.b16 %v1007
        %v1040 = vpack.c.b16 %v1025, %v1024
        %v1041 = vpack.c.b16 %v1027, %v1026
        %v1042 = vpack.c.b16 %v1029, %v1028
        %v1043 = vpack.c.b16 %v1031, %v1030
        %v1044 = vpack.c.b16 %v1033, %v1032
        %v1045 = vpack.c.b16 %v1035, %v1034
        %v1046 = vpack.c.b16 %v1037, %v1036
        %v1047 = vpack.c.b16 %v1039, %v1038
        %1056 = vmatpush.bf16.msra.mxu0 %v1047
        %1057 = vmatpush.bf16.msra.mxu0 %v1046
        %1058 = vmatpush.bf16.msra.mxu0 %v1045
        %1059 = vmatpush.bf16.msra.mxu0 %v1044
        %1060 = vmatpush.bf16.msra.mxu0 %v1043
        %1061 = vmatpush.bf16.msra.mxu0 %v1042
        %1062 = vmatpush.bf16.msra.mxu0 %v1041
        %1063 = vmatpush.bf16.msra.mxu0 %v1040
        %1064 = vmatmul.bf16.gmra.mxu0 %v973
        %v1065 = vpop.f32.mrf.mxu0
        %v1066 = vadd.f32 0.0, %v1065
        %v1067 = vpop.f32.mrf.mxu0
        %1068 = vdwg.mxu0
        %v1085 = vunpack.c.l.b16 %v975
        %v1086 = vunpack.c.l.b16 %v976
        %v1087 = vunpack.c.l.b16 %v977
        %v1088 = vunpack.c.l.b16 %v978
        %v1089 = vunpack.c.l.b16 %v979
        %v1090 = vunpack.c.l.b16 %v980
        %v1091 = vunpack.c.l.b16 %v981
        %v1092 = vunpack.c.l.b16 %v982
        %v1093 = vunpack.c.l.b16 %v983
        %v1094 = vunpack.c.l.b16 %v984
        %v1095 = vunpack.c.l.b16 %v985
        %v1096 = vunpack.c.l.b16 %v986
        %v1097 = vunpack.c.l.b16 %v987
        %v1098 = vunpack.c.l.b16 %v988
        %v1099 = vunpack.c.l.b16 %v989
        %v1100 = vunpack.c.l.b16 %v990
        %v1101 = vpack.c.b16 %v1086, %v1085
        %v1102 = vpack.c.b16 %v1088, %v1087
        %v1103 = vpack.c.b16 %v1090, %v1089
        %v1104 = vpack.c.b16 %v1092, %v1091
        %v1105 = vpack.c.b16 %v1094, %v1093
        %v1106 = vpack.c.b16 %v1096, %v1095
        %v1107 = vpack.c.b16 %v1098, %v1097
        %v1108 = vpack.c.b16 %v1100, %v1099
        %1117 = vmatpush.bf16.msra.mxu0 %v1108
        %1118 = vmatpush.bf16.msra.mxu0 %v1107
        %1119 = vmatpush.bf16.msra.mxu0 %v1106
        %1120 = vmatpush.bf16.msra.mxu0 %v1105
        %1121 = vmatpush.bf16.msra.mxu0 %v1104
        %1122 = vmatpush.bf16.msra.mxu0 %v1103
        %1123 = vmatpush.bf16.msra.mxu0 %v1102
        %1124 = vmatpush.bf16.msra.mxu0 %v1101
        %1125 = vmatmul.bf16.gmra.mxu0 %v973
        %v1126 = vpop.f32.mrf.mxu0
        %v1127 = vadd.f32 %v1066, %v1126
        %v1128 = vpop.f32.mrf.mxu0
        %1129 = vdwg.mxu0
        %v1130 = vsub.f32 %v1127, %v868
        %v1131 = vmul.f32 %v1130, %v1130
        %v1132 = vmul.f32 %v1131, %v303
        %1133 = vadd.xlane.f32.xlu0 %v1132
        %v1134 = vpop.xlane.xlu0 %1133
        %v1135 = vrot.slane %v1134, 4
        %v1136 = vadd.f32 %v1134, %v1135
        %v1137 = vrot.slane %v1136, 2
        %v1138 = vadd.f32 %v1136, %v1137
        %v1139 = vrot.slane %v1138, 1
        %v1140 = vadd.f32 %v1138, %v1139
        %s1141 = vtos %v1140
        %vm1142 = vcmp.eq.s32.totalorder %v297, 2
        %v1143 = vstv %s1141
        %v1144 = vsel %vm1142, %v1143, %v862
        %v1145 = vperm.slane %v969, %v305
        %v1146 = vsel %vm580, %v1145, %v1145
        %v1147 = vsel %vm582, %v1145, %v1146
        %v1148 = vsel %vm1142, %v1147, %v866
        %v1149 = vadd.f32 %v867, %v1127
        %v1150 = vsub.f32 %v868, %v1127
        %v1151 = vld [vmem:[%s2 + $0x3] sm:$0x1]
        %s1152 = scalar_lea.vmem %s1, 192
        %v1153 = vld [vmem:[%s1152] sm:$0xf]
        %v1154 = vld [vmem:[%s1152 + $0x4] sm:$0xf]
        %v1155 = vld [vmem:[%s1152 + $0x8] sm:$0xf]
        %v1156 = vld [vmem:[%s1152 + $0xc] sm:$0xf]
        %v1157 = vld [vmem:[%s1152 + $0x10] sm:$0xf]
        %v1158 = vld [vmem:[%s1152 + $0x14] sm:$0xf]
        %v1159 = vld [vmem:[%s1152 + $0x18] sm:$0xf]
        %v1160 = vld [vmem:[%s1152 + $0x1c] sm:$0xf]
        %v1161 = vld [vmem:[%s1152 + $0x20] sm:$0xf]
        %v1162 = vld [vmem:[%s1152 + $0x24] sm:$0xf]
        %v1163 = vld [vmem:[%s1152 + $0x28] sm:$0xf]
        %v1164 = vld [vmem:[%s1152 + $0x2c] sm:$0xf]
        %v1165 = vld [vmem:[%s1152 + $0x30] sm:$0xf]
        %v1166 = vld [vmem:[%s1152 + $0x34] sm:$0xf]
        %v1167 = vld [vmem:[%s1152 + $0x38] sm:$0xf]
        %v1168 = vld [vmem:[%s1152 + $0x3c] sm:$0xf]
        %v1169 = vpack.c.bf16 %v1150, %v1150
        %v1186 = vunpack.c.l.b16 %v1153
        %v1187 = vunpack.c.l.b16 %v1154
        %v1188 = vunpack.c.l.b16 %v1155
        %v1189 = vunpack.c.l.b16 %v1156
        %v1190 = vunpack.c.l.b16 %v1157
        %v1191 = vunpack.c.l.b16 %v1158
        %v1192 = vunpack.c.l.b16 %v1159
        %v1193 = vunpack.c.l.b16 %v1160
        %v1194 = vunpack.c.l.b16 %v1161
        %v1195 = vunpack.c.l.b16 %v1162
        %v1196 = vunpack.c.l.b16 %v1163
        %v1197 = vunpack.c.l.b16 %v1164
        %v1198 = vunpack.c.l.b16 %v1165
        %v1199 = vunpack.c.l.b16 %v1166
        %v1200 = vunpack.c.l.b16 %v1167
        %v1201 = vunpack.c.l.b16 %v1168
        %v1202 = vpack.c.b16 %v1187, %v1186
        %v1203 = vpack.c.b16 %v1189, %v1188
        %v1204 = vpack.c.b16 %v1191, %v1190
        %v1205 = vpack.c.b16 %v1193, %v1192
        %v1206 = vpack.c.b16 %v1195, %v1194
        %v1207 = vpack.c.b16 %v1197, %v1196
        %v1208 = vpack.c.b16 %v1199, %v1198
        %v1209 = vpack.c.b16 %v1201, %v1200
        %1218 = vmatpush.bf16.msra.mxu0 %v1209
        %1219 = vmatpush.bf16.msra.mxu0 %v1208
        %1220 = vmatpush.bf16.msra.mxu0 %v1207
        %1221 = vmatpush.bf16.msra.mxu0 %v1206
        %1222 = vmatpush.bf16.msra.mxu0 %v1205
        %1223 = vmatpush.bf16.msra.mxu0 %v1204
        %1224 = vmatpush.bf16.msra.mxu0 %v1203
        %1225 = vmatpush.bf16.msra.mxu0 %v1202
        %1226 = vmatmul.bf16.gmra.mxu0 %v1169
        %v1227 = vpop.f32.mrf.mxu0
        %v1228 = vadd.f32 0.0, %v1227
        %v1229 = vpop.f32.mrf.mxu0
        %1230 = vdwg.mxu0
        %v1231 = vmul.f32 %v1151, 0.5
        %v1232 = vperm.slane %v1231, 0
        %v1233 = vsub.f32 %v1228, %v1232
        %1234 = vmax.xlane.f32.xlu0 %v1233
        %v1235 = vpop.xlane.xlu0 %1234
        %vm1236 = vcmp.eq.f32.partialorder %v1233, %v1235
        %v1237 = vsel %vm1236, %v305, 128
        %v1238 = vand.u32 %v1237, 65535
        %v1239 = vshra.s32 %v1237, 16
        %v1240 = vcvt.s32.f32 %v1238
        %v1241 = vcvt.s32.f32 %v1239
        %1242 = vmin.xlane.f32.xlu0 %v1241
        %v1243 = vpop.xlane.xlu0 %1242
        %vm1244 = vcmp.eq.f32.partialorder %v1241, %v1243
        %v1245 = vsel %vm1244, %v1240, inf
        %1246 = vmin.xlane.f32.xlu0 %v1245
        %v1247 = vpop.xlane.xlu0 %1246
        %v1248 = vcvt.f32.s32 %v1247
        %v1249 = vcvt.f32.s32 %v1243
        %v1250 = vshll.u32 %v1249, 16
        %v1251 = vadd.s32 %v1250, %v1248
        %vm1252 = vcmp.eq.s32.totalorder %v305, %v1251
        %v1253 = vsel %vm1252, 1, 0
        %v1254 = vcvt.s32.f32 %v1253
        %v1255 = vpack.c.bf16 %v1254, %v1254
        %s1256 = scalar_lea.vmem %s3, 192
        %v1257 = vld [vmem:[%s1256] sm:$0xf]
        %v1258 = vld [vmem:[%s1256 + $0x4] sm:$0xf]
        %v1259 = vld [vmem:[%s1256 + $0x8] sm:$0xf]
        %v1260 = vld [vmem:[%s1256 + $0xc] sm:$0xf]
        %v1261 = vld [vmem:[%s1256 + $0x10] sm:$0xf]
        %v1262 = vld [vmem:[%s1256 + $0x14] sm:$0xf]
        %v1263 = vld [vmem:[%s1256 + $0x18] sm:$0xf]
        %v1264 = vld [vmem:[%s1256 + $0x1c] sm:$0xf]
        %v1265 = vld [vmem:[%s1256 + $0x20] sm:$0xf]
        %v1266 = vld [vmem:[%s1256 + $0x24] sm:$0xf]
        %v1267 = vld [vmem:[%s1256 + $0x28] sm:$0xf]
        %v1268 = vld [vmem:[%s1256 + $0x2c] sm:$0xf]
        %v1269 = vld [vmem:[%s1256 + $0x30] sm:$0xf]
        %v1270 = vld [vmem:[%s1256 + $0x34] sm:$0xf]
        %v1271 = vld [vmem:[%s1256 + $0x38] sm:$0xf]
        %v1272 = vld [vmem:[%s1256 + $0x3c] sm:$0xf]
        %s1273 = scalar_lea.vmem %s4, 192
        %v1274 = vld [vmem:[%s1273] sm:$0xf]
        %v1275 = vld [vmem:[%s1273 + $0x4] sm:$0xf]
        %v1276 = vld [vmem:[%s1273 + $0x8] sm:$0xf]
        %v1277 = vld [vmem:[%s1273 + $0xc] sm:$0xf]
        %v1278 = vld [vmem:[%s1273 + $0x10] sm:$0xf]
        %v1279 = vld [vmem:[%s1273 + $0x14] sm:$0xf]
        %v1280 = vld [vmem:[%s1273 + $0x18] sm:$0xf]
        %v1281 = vld [vmem:[%s1273 + $0x1c] sm:$0xf]
        %v1282 = vld [vmem:[%s1273 + $0x20] sm:$0xf]
        %v1283 = vld [vmem:[%s1273 + $0x24] sm:$0xf]
        %v1284 = vld [vmem:[%s1273 + $0x28] sm:$0xf]
        %v1285 = vld [vmem:[%s1273 + $0x2c] sm:$0xf]
        %v1286 = vld [vmem:[%s1273 + $0x30] sm:$0xf]
        %v1287 = vld [vmem:[%s1273 + $0x34] sm:$0xf]
        %v1288 = vld [vmem:[%s1273 + $0x38] sm:$0xf]
        %v1289 = vld [vmem:[%s1273 + $0x3c] sm:$0xf]
        %v1306 = vunpack.c.l.b16 %v1274
        %v1307 = vunpack.c.l.b16 %v1275
        %v1308 = vunpack.c.l.b16 %v1276
        %v1309 = vunpack.c.l.b16 %v1277
        %v1310 = vunpack.c.l.b16 %v1278
        %v1311 = vunpack.c.l.b16 %v1279
        %v1312 = vunpack.c.l.b16 %v1280
        %v1313 = vunpack.c.l.b16 %v1281
        %v1314 = vunpack.c.l.b16 %v1282
        %v1315 = vunpack.c.l.b16 %v1283
        %v1316 = vunpack.c.l.b16 %v1284
        %v1317 = vunpack.c.l.b16 %v1285
        %v1318 = vunpack.c.l.b16 %v1286
        %v1319 = vunpack.c.l.b16 %v1287
        %v1320 = vunpack.c.l.b16 %v1288
        %v1321 = vunpack.c.l.b16 %v1289
        %v1322 = vpack.c.b16 %v1307, %v1306
        %v1323 = vpack.c.b16 %v1309, %v1308
        %v1324 = vpack.c.b16 %v1311, %v1310
        %v1325 = vpack.c.b16 %v1313, %v1312
        %v1326 = vpack.c.b16 %v1315, %v1314
        %v1327 = vpack.c.b16 %v1317, %v1316
        %v1328 = vpack.c.b16 %v1319, %v1318
        %v1329 = vpack.c.b16 %v1321, %v1320
        %1338 = vmatpush.bf16.msra.mxu0 %v1329
        %1339 = vmatpush.bf16.msra.mxu0 %v1328
        %1340 = vmatpush.bf16.msra.mxu0 %v1327
        %1341 = vmatpush.bf16.msra.mxu0 %v1326
        %1342 = vmatpush.bf16.msra.mxu0 %v1325
        %1343 = vmatpush.bf16.msra.mxu0 %v1324
        %1344 = vmatpush.bf16.msra.mxu0 %v1323
        %1345 = vmatpush.bf16.msra.mxu0 %v1322
        %1346 = vmatmul.bf16.gmra.mxu0 %v1255
        %v1347 = vpop.f32.mrf.mxu0
        %v1348 = vadd.f32 0.0, %v1347
        %v1349 = vpop.f32.mrf.mxu0
        %1350 = vdwg.mxu0
        %v1367 = vunpack.c.l.b16 %v1257
        %v1368 = vunpack.c.l.b16 %v1258
        %v1369 = vunpack.c.l.b16 %v1259
        %v1370 = vunpack.c.l.b16 %v1260
        %v1371 = vunpack.c.l.b16 %v1261
        %v1372 = vunpack.c.l.b16 %v1262
        %v1373 = vunpack.c.l.b16 %v1263
        %v1374 = vunpack.c.l.b16 %v1264
        %v1375 = vunpack.c.l.b16 %v1265
        %v1376 = vunpack.c.l.b16 %v1266
        %v1377 = vunpack.c.l.b16 %v1267
        %v1378 = vunpack.c.l.b16 %v1268
        %v1379 = vunpack.c.l.b16 %v1269
        %v1380 = vunpack.c.l.b16 %v1270
        %v1381 = vunpack.c.l.b16 %v1271
        %v1382 = vunpack.c.l.b16 %v1272
        %v1383 = vpack.c.b16 %v1368, %v1367
        %v1384 = vpack.c.b16 %v1370, %v1369
        %v1385 = vpack.c.b16 %v1372, %v1371
        %v1386 = vpack.c.b16 %v1374, %v1373
        %v1387 = vpack.c.b16 %v1376, %v1375
        %v1388 = vpack.c.b16 %v1378, %v1377
        %v1389 = vpack.c.b16 %v1380, %v1379
        %v1390 = vpack.c.b16 %v1382, %v1381
        %1399 = vmatpush.bf16.msra.mxu0 %v1390
        %1400 = vmatpush.bf16.msra.mxu0 %v1389
        %1401 = vmatpush.bf16.msra.mxu0 %v1388
        %1402 = vmatpush.bf16.msra.mxu0 %v1387
        %1403 = vmatpush.bf16.msra.mxu0 %v1386
        %1404 = vmatpush.bf16.msra.mxu0 %v1385
        %1405 = vmatpush.bf16.msra.mxu0 %v1384
        %1406 = vmatpush.bf16.msra.mxu0 %v1383
        %1407 = vmatmul.bf16.gmra.mxu0 %v1255
        %v1408 = vpop.f32.mrf.mxu0
        %v1409 = vadd.f32 %v1348, %v1408
        %v1410 = vpop.f32.mrf.mxu0
        %1411 = vdwg.mxu0
        %v1412 = vsub.f32 %v1409, %v1150
        %v1413 = vmul.f32 %v1412, %v1412
        %v1414 = vmul.f32 %v1413, %v303
        %1415 = vadd.xlane.f32.xlu0 %v1414
        %v1416 = vpop.xlane.xlu0 %1415
        %v1417 = vrot.slane %v1416, 4
        %v1418 = vadd.f32 %v1416, %v1417
        %v1419 = vrot.slane %v1418, 2
        %v1420 = vadd.f32 %v1418, %v1419
        %v1421 = vrot.slane %v1420, 1
        %v1422 = vadd.f32 %v1420, %v1421
        %s1423 = vtos %v1422
        %vm1424 = vcmp.eq.s32.totalorder %v297, 3
        %v1425 = vstv %s1423
        %v1426 = vsel %vm1424, %v1425, %v1144
        %v1427 = vperm.slane %v1251, %v305
        %v1428 = vsel %vm580, %v1427, %v1427
        %v1429 = vsel %vm582, %v1427, %v1428
        %v1430 = vsel %vm1424, %v1429, %v1148
        %v1431 = vadd.f32 %v1149, %v1409
        %1432 = vst [vmem:[%s290] sm:$0xff] %v1431
        %vm1433 = vcmask 60416
        %1434 = vst.msk [vmem:[%s276] sm:$0xf] %vm1433, %v1430
        %1435 = vst [vmem:[%s294] sm:$0xf] %v1426
        %p1436 = scmp.lt.s32.totalorder %s22, 1
        %s1437 = scalar_select %p1436, %s22, 1
        %s1438 = smul.addr %s1437, 8
        %s1439 = scalar_lea.vmem %s5, %s1438
        %s1440 = sand.u32 %s166, 1
        %s1441 = scalar_lea.sflag [#allocation3], %s1440
        %s1442 = sand.u32 %s166, 1
        %s1443 = smul.addr %s1442, 4
        %s1444 = scalar_lea.vmem [#allocation2], %s1443
        %p1445 = scmp.lt.s32.totalorder %s22, 1
        %s1446 = scalar_select %p1445, %s22, 1
        %s1447 = smul.addr %s1446, 4
        %s1448 = scalar_lea.vmem %s7, %s1447
        // Predicated region
        $region41: #{residual_quantize.1} parent=39 // pred_check
          %p1449 = pneg %p150
        $region42: #{residual_quantize.1} parent=39 // pred_check_branch
          %1451 = sbr.rel (%p1449) target = $region44
        $region43: #{residual_quantize.1} parent=39 // pred_region
          _
        $region44: #{residual_quantize.1} parent=39 // pred_fallthru
          _
        // Predicated region
        $region45: #{residual_quantize.1} parent=39 // pred_check
          %p1452 = pneg %p176
        $region46: #{residual_quantize.1} parent=39 // pred_check_branch
          %1454 = sbr.rel (%p1452) target = $region48
        $region47: #{residual_quantize.1} parent=39 // pred_region
          %1456 = vsyncadd %s1441, 0
          %s1457 = smul.addr %s22, 4
          %s1458 = scalar_lea.hbm %s6, %s1457
          %s1460 = sshll.u32 %s1444, 4
          %s1461 = int_to_ptr.vmem [resolvable:$true] %s1460
          %s1462 = sshll.u32 %s1458, 4
          %s1463 = int_to_ptr.hbm [resolvable:$true] %s1462
          %1465 = dma.vmem_to_hbm [thread:$0]  %s1461, 64, %s1463, %s1441
        $region48: #{residual_quantize.1} parent=39 // pred_fallthru
          _
        // Predicated region
        $region49: #{residual_quantize.1} parent=39 // pred_check
          %p1466 = pneg %p202
        $region50: #{residual_quantize.1} parent=39 // pred_check_branch
          %1468 = sbr.rel (%p1466) target = $region52
        $region51: #{residual_quantize.1} parent=39 // pred_region
          _
        $region52: #{residual_quantize.1} parent=39 // pred_fallthru
          _
      $region40: #{residual_quantize.1} parent=5 // pred_fallthru
        _
      %p1469 = scmp.le.s32.totalorder 2, %s17
      // Predicated region
      $region53: #{residual_quantize.1} parent=5 // pred_check
        %p1470 = pneg %p1469
      $region54: #{residual_quantize.1} parent=5 // pred_check_branch
        %1472 = sbr.rel (%p1470) target = $region56
      $region55: #{residual_quantize.1} parent=5 // pred_region
        %s1473 = ssub.s32 %s17, 2
        // Predicated region
        $region57: #{residual_quantize.1} parent=55 // pred_check
          %p1474 = pneg %p156
        $region58: #{residual_quantize.1} parent=55 // pred_check_branch
          %1476 = sbr.rel (%p1474) target = $region60
        $region59: #{residual_quantize.1} parent=55 // pred_region
          %p1477 = scmp.lt.s32.totalorder %s23, 1
          %s1478 = scalar_select %p1477, %s23, 1
          %s1479 = smul.addr %s1478, 8
          %s1480 = scalar_lea.vmem %s5, %s1479
        $region60: #{residual_quantize.1} parent=55 // pred_fallthru
          _
        // Predicated region
        $region61: #{residual_quantize.1} parent=55 // pred_check
          %p1481 = pneg %p182
        $region62: #{residual_quantize.1} parent=55 // pred_check_branch
          %1483 = sbr.rel (%p1481) target = $region64
        $region63: #{residual_quantize.1} parent=55 // pred_region
          %s1484 = sand.u32 %s167, 1
          %s1485 = scalar_lea.sflag [#allocation3], %s1484
          %s1486 = sand.u32 %s167, 1
          %s1487 = smul.addr %s1486, 4
          %s1488 = scalar_lea.vmem [#allocation2], %s1487
          %1490 = dma.done %s1485, 64
        $region64: #{residual_quantize.1} parent=55 // pred_fallthru
          _
        // Predicated region
        $region65: #{residual_quantize.1} parent=55 // pred_check
          %p1491 = pneg %p208
        $region66: #{residual_quantize.1} parent=55 // pred_check_branch
          %1493 = sbr.rel (%p1491) target = $region68
        $region67: #{residual_quantize.1} parent=55 // pred_region
          %p1494 = scmp.lt.s32.totalorder %s23, 1
          %s1495 = scalar_select %p1494, %s23, 1
          %s1496 = smul.addr %s1495, 4
          %s1497 = scalar_lea.vmem %s7, %s1496
        $region68: #{residual_quantize.1} parent=55 // pred_fallthru
          _
      $region56: #{residual_quantize.1} parent=5 // pred_fallthru
        _
    $region6: #{residual_quantize.1} parent=1 // loop_footer
      %s21 = sadd.s32 1, %s17
    $region7: #{residual_quantize.1} parent=1 // loop_footer_branch
      %16 = sbr.rel target = $region3
    $region8: #{residual_quantize.1} parent=1 // loop_exit
      _
    %1498 = vsyncpa [#allocation3], 1
    %s1499 = scalar_lea.sflag [#allocation3], 1
    %1500 = vsyncpa %s1499, 1

</llo_original>
